<compile_context>
chip_gen: v6e
topology: v6e:2x2x1
jax: 0.10.0
libtpu: 0.0.40
codegen_flags: <defaults>
</compile_context>

<pallas_src>
import functools

import jax
import jax.numpy as jnp
from jax import lax
from jax.experimental import pallas as pl
from jax.experimental.pallas import tpu as pltpu


def _flash_attn_kernel(x_q_ref, k_ref, v_ref, wq_ref, bq_ref, gamma_ref,
                       o_ref, q_scr, m_scr, acc_scr,
                       *, channels, n_valid, block_k, need_mask, bf16_p):
    ki = pl.program_id(2)

    @pl.when(ki == 0)
    def _init():
        # Q projection for this query tile (1x1 conv == matmul), once per (b, qi).
        x_q = x_q_ref[0].astype(jnp.bfloat16)                              # (bq, C)
        q = jnp.dot(x_q, wq_ref[...],
                    preferred_element_type=jnp.float32) + bq_ref[...]      # (bq, C8) f32
        q_scr[...] = q.astype(jnp.bfloat16)
        m_scr[...] = jnp.full_like(m_scr, -1e30)
        acc_scr[...] = jnp.zeros_like(acc_scr)

    # Slice the per-batch-resident K / [V | 1] buffers (no per-step HBM restream).
    off = pl.multiple_of(ki * block_k, block_k)
    k = k_ref[0, pl.ds(off, block_k), :]                                   # (bk, C8)  bf16
    v = v_ref[0, pl.ds(off, block_k), :]                                   # (bk, C+1) bf16

    # energy[i, j] = sum_d Q[i, d] * K[j, d]   (A @ B^T form, no transpose op).
    s = lax.dot_general(q_scr[...], k, (((1,), (1,)), ((), ())),
                        preferred_element_type=jnp.float32)                # (bq, bk) f32

    if need_mask:  # static: only emitted when N was padded up to the key tile
        key_idx = off + lax.broadcasted_iota(jnp.int32, s.shape, 1)
        s = jnp.where(key_idx < n_valid, s, -1e30)

    # Online softmax over the key axis (deferred normalization).  The softmax
    # denominator rides along as the last lane of acc via the ones column of V.
    m_prev = m_scr[...]                                                    # (bq, 1)
    m_new = jnp.maximum(m_prev, jnp.max(s, axis=-1, keepdims=True))
    alpha = jnp.exp(m_prev - m_new)
    if bf16_p:   # v6e / v7x: bf16 EUP exp, halves p's vreg pressure
        p = jnp.exp((s - m_new).astype(jnp.bfloat16))
    else:        # v5e path: keep exp in f32, cast only for the MXU operand
        p = jnp.exp(s - m_new).astype(jnp.bfloat16)
    acc_scr[...] = alpha * acc_scr[...] + jnp.dot(
        p, v, preferred_element_type=jnp.float32)                          # (bq, C+1) f32
    m_scr[...] = m_new

    @pl.when(ki == pl.num_programs(2) - 1)
    def _finalize():
        acc = acc_scr[...]
        inv_l = pl.reciprocal(acc[:, channels:channels + 1], approx=True)  # (bq, 1)
        out = acc[:, :channels] * (gamma_ref[0] * inv_l)                   # gamma folded in
        o_ref[0] = (out + x_q_ref[0]).astype(o_ref.dtype)


def _tpu_tuning():
    """(block_k, bf16_exp) defaults per TPU generation; conservative fallback."""
    try:
        kind = jax.devices()[0].device_kind.lower()
    except Exception:
        return 128, False
    if any(t in kind for t in ("v2", "v3", "v4", "v5")):
        return 128, False        # 128-native MXU tiles; v5e has no bf16 VPU/EUP
    return 256, True             # v6e / v7x: 256-wide MXU, bf16 EUP


def spectrogram_attention(x, params, *, block_q=128, block_k=None, bf16_exp=None):
    """x: (B, C, H, W) float32 NCHW. Returns (B, C, H, W) float32."""
    B, C, H, W = x.shape
    N = H * W
    C8 = C // 8
    assert C8 >= 1, "channels must be >= 8 (channels // 8 projection)"

    auto_bk, auto_bf16 = _tpu_tuning()
    if block_k is None:
        block_k = auto_bk
    if bf16_exp is None:
        bf16_exp = auto_bf16
    if block_q > block_k:
        block_q = block_k
    assert block_k % block_q == 0

    n_pad = ((N + block_k - 1) // block_k) * block_k
    # Invariant (review concern): every key tile must contain >= 1 valid key,
    # otherwise a fully-masked tile would leave m = -1e30 and corrupt acc.
    assert n_pad - N < block_k

    # v7x megacore: make sure both TensorCores get work (B * n_q >= 2).
    while B * (n_pad // block_q) < 2 and block_q > 8:
        block_q //= 2
    n_q = n_pad // block_q
    n_k = n_pad // block_k

    # Positions-on-sublanes / channels-on-lanes layout (== permute(0, 2, 1)).
    x_nc = jnp.transpose(x.reshape(B, C, N), (0, 2, 1)).astype(jnp.float32)

    # Precompute K and [V | 1] once; kernel keeps them resident per batch.
    k_all = (jnp.einsum("bnc,co->bno", x_nc, params["wk"].T)
             + params["bk"]).astype(jnp.bfloat16)                              # (B, N, C8)
    v_all = jnp.einsum("bnc,co->bno", x_nc, params["wv"].T) + params["bv"]     # (B, N, C)
    v_aug = jnp.concatenate(
        [v_all, jnp.ones((B, N, 1), v_all.dtype)], axis=-1).astype(jnp.bfloat16)

    if n_pad != N:
        pad = ((0, 0), (0, n_pad - N), (0, 0))
        x_nc = jnp.pad(x_nc, pad)
        k_all = jnp.pad(k_all, pad)
        v_aug = jnp.pad(v_aug, pad)

    wq_t = params["wq"].T.astype(jnp.bfloat16)                                 # (C, C8)
    bq = params["bq"].reshape(1, C8).astype(jnp.float32)
    gamma = params["gamma"].reshape(1).astype(jnp.float32)

    kernel = functools.partial(
        _flash_attn_kernel, channels=C, n_valid=N, block_k=block_k,
        need_mask=(n_pad != N), bf16_p=bf16_exp)

    # Advisory cost estimate so XLA schedules around a long custom call.
    flops = 2 * B * (n_pad * C * C8                     # Q projection
                     + n_pad * n_pad * C8               # energy (Q @ K^T)
                     + n_pad * n_pad * (C + 1))         # P @ [V | 1]
    bytes_accessed = (4 * B * n_pad * C                 # x (f32: query + residual)
                      + 2 * B * n_pad * (C8 + C + 1)    # resident K / V_aug (bf16, once)
                      + 4 * B * n_pad * C)              # output (f32)
    cost = pl.CostEstimate(flops=int(flops),
                           transcendentals=int(B * n_pad * n_pad),
                           bytes_accessed=int(bytes_accessed))

    full = lambda shape: pl.BlockSpec(shape, lambda b, qi, ki: (0, 0))

    out = pl.pallas_call(
        kernel,
        out_shape=jax.ShapeDtypeStruct((B, n_pad, C), jnp.float32),
        grid_spec=pltpu.PrefetchScalarGridSpec(
            num_scalar_prefetch=0,
            grid=(B, n_q, n_k),
            in_specs=[
                pl.BlockSpec((1, block_q, C), lambda b, qi, ki: (b, qi, 0)),    # x_q (f32)
                pl.BlockSpec((1, n_pad, C8), lambda b, qi, ki: (b, 0, 0)),      # K resident
                pl.BlockSpec((1, n_pad, C + 1), lambda b, qi, ki: (b, 0, 0)),   # [V|1] resident
                full((C, C8)),                                                  # Wq^T
                full((1, C8)),                                                  # bq
                pl.BlockSpec(memory_space=pltpu.MemorySpace.SMEM),              # gamma
            ],
            out_specs=pl.BlockSpec((1, block_q, C), lambda b, qi, ki: (b, qi, 0)),
            scratch_shapes=[
                pltpu.VMEM((block_q, C8), jnp.bfloat16),      # Q tile
                pltpu.VMEM((block_q, 1), jnp.float32),        # running max
                pltpu.VMEM((block_q, C + 1), jnp.float32),    # numerator | denominator
            ]),
        compiler_params=pltpu.CompilerParams(
            dimension_semantics=("parallel", "parallel", "arbitrary"),
            vmem_limit_bytes=32 * 1024 * 1024),
        cost_estimate=cost,
    )(x_nc, k_all, v_aug, wq_t, bq, gamma)

    out = out[:, :N, :]                                   # drop padded query rows
    return jnp.transpose(out, (0, 2, 1)).reshape(B, C, H, W)


def spectrogram_attention_ref(x, params):
    """Pure-JAX f32 reference mirroring the PyTorch forward."""
    B, C, H, W = x.shape
    N = H * W
    xf = x.reshape(B, C, N).astype(jnp.float32)
    q = jnp.einsum("oc,bcn->bon", params["wq"], xf) + params["bq"][None, :, None]
    k = jnp.einsum("oc,bcn->bon", params["wk"], xf) + params["bk"][None, :, None]
    v = jnp.einsum("oc,bcn->bon", params["wv"], xf) + params["bv"][None, :, None]
    energy = jnp.einsum("bci,bcj->bij", q, k)             # bmm(Q^T, K)
    attn = jax.nn.softmax(energy, axis=2)
    out = jnp.einsum("bcj,bij->bci", v, attn)             # bmm(V, A^T)
    out = out.reshape(B, C, H, W)
    return params["gamma"][0] * out + x


def init_params(key, channels):
    """Deterministic parameter init matching the module's shapes.

    Conv2d(k=1) weights of shape (out, in, 1, 1) are stored squeezed as (out, in).
    """
    C = channels
    C8 = C // 8
    ks = jax.random.split(key, 6)
    scale = 1.0 / jnp.sqrt(C)
    return {
        "wq": jax.random.uniform(ks[0], (C8, C), jnp.float32, -scale, scale),
        "bq": jax.random.uniform(ks[1], (C8,), jnp.float32, -scale, scale),
        "wk": jax.random.uniform(ks[2], (C8, C), jnp.float32, -scale, scale),
        "bk": jax.random.uniform(ks[3], (C8,), jnp.float32, -scale, scale),
        "wv": jax.random.uniform(ks[4], (C, C), jnp.float32, -scale, scale),
        "bv": jax.random.uniform(ks[5], (C,), jnp.float32, -scale, scale),
        # Module init is torch.zeros(1); use a nonzero value so the attention
        # path is actually exercised.
        "gamma": jnp.array([0.5], dtype=jnp.float32),
    }


if __name__ == "__main__":
    # N = 144 -> padded to a tile multiple: exercises key masking, the online
    # softmax accumulation and both "parallel" grid axes.
    B, C, H, W = 2, 32, 12, 12
    key = jax.random.PRNGKey(0)
    kx, kp = jax.random.split(key)
    x = jax.random.normal(kx, (B, C, H, W), dtype=jnp.float32)
    params = init_params(kp, C)

    y = spectrogram_attention(x, params)
    y = jax.block_until_ready(y)

    y_ref = spectrogram_attention_ref(x, params)
    assert y.shape == (B, C, H, W)
    # bf16 MXU operands + approx reciprocal => modest tolerance vs the f32 reference.
    assert jnp.allclose(y, y_ref, atol=5e-2, rtol=5e-2), (
        "mismatch vs reference: max abs err = "
        f"{jnp.max(jnp.abs(y - y_ref))}")
    print("KERNEL_OK")
</pallas_src>

<mosaic_0001>
module attributes {stable_mosaic.version = 11 : i64} {
  func.func @_flash_attn_kernel(%arg0: i32, %arg1: i32, %arg2: i32, %arg3: memref<1x128x32xf32, #tpu.memory_space<vmem>>, %arg4: memref<1x256x4xbf16, #tpu.memory_space<vmem>>, %arg5: memref<1x256x33xbf16, #tpu.memory_space<vmem>>, %arg6: memref<32x4xbf16, #tpu.memory_space<vmem>>, %arg7: memref<1x4xf32, #tpu.memory_space<vmem>>, %arg8: memref<1xf32, #tpu.memory_space<smem>>, %arg9: memref<1x128x32xf32, #tpu.memory_space<vmem>>, %arg10: memref<128x4xbf16, #tpu.memory_space<vmem>>, %arg11: memref<128x1xf32, #tpu.memory_space<vmem>>, %arg12: memref<128x33xf32, #tpu.memory_space<vmem>>) attributes {dimension_semantics = [#tpu.dimension_semantics<parallel>, #tpu.dimension_semantics<parallel>, #tpu.dimension_semantics<arbitrary>], iteration_bounds = array<i64: 2, 2, 1>, scalar_prefetch = 0 : i64, scratch_operands = 3 : i64, tpu.core_type = #tpu.core_type<tc>, window_params = [{transform_indices = @transform_0, window_bounds = array<i64: 1, 128, 32>}, {transform_indices = @transform_1, window_bounds = array<i64: 1, 256, 4>}, {transform_indices = @transform_2, window_bounds = array<i64: 1, 256, 33>}, {pipeline_mode = #tpu.pipeline_mode<synchronous>, transform_indices = @transform_3, window_bounds = array<i64: 32, 4>}, {pipeline_mode = #tpu.pipeline_mode<synchronous>, transform_indices = @transform_4, window_bounds = array<i64: 1, 4>}, {transform_indices = @transform_5, window_bounds = array<i64: 1>}, {transform_indices = @transform_6, window_bounds = array<i64: 1, 128, 32>}]} {
    %c0_i32 = arith.constant 0 : i32
    %0 = arith.cmpi eq, %arg2, %c0_i32 : i32
    %1 = arith.extui %0 : i1 to i32
    %c0_i32_0 = arith.constant 0 : i32
    %2 = arith.cmpi ne, %1, %c0_i32_0 : i32
    scf.if %2 {
      %c0_19 = arith.constant 0 : index
      %c0_20 = arith.constant 0 : index
      %c0_21 = arith.constant 0 : index
      %40 = vector.load %arg3[%c0_19, %c0_20, %c0_21] : memref<1x128x32xf32, #tpu.memory_space<vmem>>, vector<1x128x32xf32>
      %41 = vector.shape_cast %40 : vector<1x128x32xf32> to vector<128x32xf32>
      %42 = arith.truncf %41 : vector<128x32xf32> to vector<128x32xbf16>
      %c0_22 = arith.constant 0 : index
      %c0_23 = arith.constant 0 : index
      %43 = vector.load %arg6[%c0_22, %c0_23] : memref<32x4xbf16, #tpu.memory_space<vmem>>, vector<32x4xbf16>
      %cst_24 = arith.constant dense<0.000000e+00> : vector<128x4xf32>
      %44 = tpu.matmul %42, %43, %cst_24 {dimension_numbers = #tpu.dot_dimension_numbers<[1], [0], [0], [1], [0, 0, 1, 1], [], []>} : vector<128x32xbf16>, vector<32x4xbf16>, vector<128x4xf32> -> vector<128x4xf32>
      %c0_25 = arith.constant 0 : index
      %c0_26 = arith.constant 0 : index
      %45 = vector.load %arg7[%c0_25, %c0_26] : memref<1x4xf32, #tpu.memory_space<vmem>>, vector<1x4xf32>
      %46 = vector.broadcast %45 : vector<1x4xf32> to vector<128x4xf32>
      %47 = arith.addf %44, %46 : vector<128x4xf32>
      %48 = arith.truncf %47 : vector<128x4xf32> to vector<128x4xbf16>
      %c0_27 = arith.constant 0 : index
      %c0_28 = arith.constant 0 : index
      %49 = vector.load %arg10[%c0_27, %c0_28] : memref<128x4xbf16, #tpu.memory_space<vmem>>, vector<128x4xbf16>
      tpu.vector_store %arg10[%c0_27, %c0_28], %48 {strides = array<i32>} : memref<128x4xbf16, #tpu.memory_space<vmem>>, vector<128x4xbf16>,
      %cst_29 = arith.constant -1.000000e+30 : f32
      %50 = vector.broadcast %cst_29 : f32 to vector<128x1xf32>
      %c0_30 = arith.constant 0 : index
      %c0_31 = arith.constant 0 : index
      %51 = vector.load %arg11[%c0_30, %c0_31] : memref<128x1xf32, #tpu.memory_space<vmem>>, vector<128x1xf32>
      tpu.vector_store %arg11[%c0_30, %c0_31], %50 {strides = array<i32>} : memref<128x1xf32, #tpu.memory_space<vmem>>, vector<128x1xf32>,
      %cst_32 = arith.constant 0.000000e+00 : f32
      %52 = vector.broadcast %cst_32 : f32 to vector<128x33xf32>
      %c0_33 = arith.constant 0 : index
      %c0_34 = arith.constant 0 : index
      %53 = vector.load %arg12[%c0_33, %c0_34] : memref<128x33xf32, #tpu.memory_space<vmem>>, vector<128x33xf32>
      tpu.vector_store %arg12[%c0_33, %c0_34], %52 {strides = array<i32>} : memref<128x33xf32, #tpu.memory_space<vmem>>, vector<128x33xf32>,
    } else {
    }
    %c256_i32 = arith.constant 256 : i32
    %3 = arith.muli %arg2, %c256_i32 : i32
    %4 = tpu.assume_multiple %3, 256 : i32
    %c0 = arith.constant 0 : index
    %5 = arith.index_cast %4 : i32 to index
    %c0_1 = arith.constant 0 : index
    %6 = vector.load %arg4[%c0, %5, %c0_1] : memref<1x256x4xbf16, #tpu.memory_space<vmem>>, vector<1x256x4xbf16>
    %7 = vector.shape_cast %6 : vector<1x256x4xbf16> to vector<256x4xbf16>
    %c0_2 = arith.constant 0 : index
    %8 = arith.index_cast %4 : i32 to index
    %c0_3 = arith.constant 0 : index
    %9 = vector.load %arg5[%c0_2, %8, %c0_3] : memref<1x256x33xbf16, #tpu.memory_space<vmem>>, vector<1x256x33xbf16>
    %10 = vector.shape_cast %9 : vector<1x256x33xbf16> to vector<256x33xbf16>
    %c0_4 = arith.constant 0 : index
    %c0_5 = arith.constant 0 : index
    %11 = vector.load %arg10[%c0_4, %c0_5] : memref<128x4xbf16, #tpu.memory_space<vmem>>, vector<128x4xbf16>
    %cst = arith.constant dense<0.000000e+00> : vector<128x256xf32>
    %12 = tpu.matmul %11, %7, %cst {dimension_numbers = #tpu.dot_dimension_numbers<[1], [1], [0], [0], [0, 0, 1, 0], [], []>} : vector<128x4xbf16>, vector<256x4xbf16>, vector<128x256xf32> -> vector<128x256xf32>
    %13 = tpu.iota {dimensions = array<i32: 1>} : vector<128x256xi32>
    %14 = vector.broadcast %4 : i32 to vector<128x256xi32>
    %15 = arith.addi %14, %13 : vector<128x256xi32>
    %c144_i32 = arith.constant 144 : i32
    %16 = vector.broadcast %c144_i32 : i32 to vector<128x256xi32>
    %17 = arith.cmpi slt, %15, %16 : vector<128x256xi32>
    %cst_6 = arith.constant -1.000000e+30 : f32
    %18 = vector.broadcast %cst_6 : f32 to vector<128x256xf32>
    %19 = arith.select %17, %12, %18 : vector<128x256xi1>, vector<128x256xf32>
    %c0_7 = arith.constant 0 : index
    %c0_8 = arith.constant 0 : index
    %20 = vector.load %arg11[%c0_7, %c0_8] : memref<128x1xf32, #tpu.memory_space<vmem>>, vector<128x1xf32>
    %cst_9 = arith.constant dense<0xFF800000> : vector<128xf32>
    %21 = vector.multi_reduction <maximumf>, %19, %cst_9 [1] : vector<128x256xf32> to vector<128xf32>
    %22 = vector.shape_cast %21 : vector<128xf32> to vector<128x1xf32>
    %23 = arith.maximumf %20, %22 : vector<128x1xf32>
    %24 = arith.subf %20, %23 : vector<128x1xf32>
    %25 = math.exp %24 : vector<128x1xf32>
    %26 = vector.broadcast %23 : vector<128x1xf32> to vector<128x256xf32>
    %27 = arith.subf %19, %26 : vector<128x256xf32>
    %28 = arith.truncf %27 : vector<128x256xf32> to vector<128x256xbf16>
    %29 = math.exp %28 : vector<128x256xbf16>
    %c0_10 = arith.constant 0 : index
    %c0_11 = arith.constant 0 : index
    %30 = vector.load %arg12[%c0_10, %c0_11] : memref<128x33xf32, #tpu.memory_space<vmem>>, vector<128x33xf32>
    %31 = vector.broadcast %25 : vector<128x1xf32> to vector<128x33xf32>
    %32 = arith.mulf %31, %30 : vector<128x33xf32>
    %cst_12 = arith.constant dense<0.000000e+00> : vector<128x33xf32>
    %33 = tpu.matmul %29, %10, %cst_12 {dimension_numbers = #tpu.dot_dimension_numbers<[1], [0], [0], [1], [0, 0, 1, 1], [], []>} : vector<128x256xbf16>, vector<256x33xbf16>, vector<128x33xf32> -> vector<128x33xf32>
    %34 = arith.addf %32, %33 : vector<128x33xf32>
    %c0_13 = arith.constant 0 : index
    %c0_14 = arith.constant 0 : index
    %35 = vector.load %arg12[%c0_13, %c0_14] : memref<128x33xf32, #tpu.memory_space<vmem>>, vector<128x33xf32>
    tpu.vector_store %arg12[%c0_13, %c0_14], %34 {strides = array<i32>} : memref<128x33xf32, #tpu.memory_space<vmem>>, vector<128x33xf32>,
    %c0_15 = arith.constant 0 : index
    %c0_16 = arith.constant 0 : index
    %36 = vector.load %arg11[%c0_15, %c0_16] : memref<128x1xf32, #tpu.memory_space<vmem>>, vector<128x1xf32>
    tpu.vector_store %arg11[%c0_15, %c0_16], %23 {strides = array<i32>} : memref<128x1xf32, #tpu.memory_space<vmem>>, vector<128x1xf32>,
    %c0_i32_17 = arith.constant 0 : i32
    %37 = arith.cmpi eq, %arg2, %c0_i32_17 : i32
    %38 = arith.extui %37 : i1 to i32
    %c0_i32_18 = arith.constant 0 : i32
    %39 = arith.cmpi ne, %38, %c0_i32_18 : i32
    scf.if %39 {
      %c0_19 = arith.constant 0 : index
      %c0_20 = arith.constant 0 : index
      %40 = vector.load %arg12[%c0_19, %c0_20] : memref<128x33xf32, #tpu.memory_space<vmem>>, vector<128x33xf32>
      %41 = vector.extract_strided_slice %40 {offsets = [0, 32], sizes = [128, 1], strides = [1, 1]} : vector<128x33xf32> to vector<128x1xf32>
      %42 = tpu.reciprocal %41 {approx = true} : vector<128x1xf32> -> vector<128x1xf32>
      %43 = vector.extract_strided_slice %40 {offsets = [0, 0], sizes = [128, 32], strides = [1, 1]} : vector<128x33xf32> to vector<128x32xf32>
      %c0_21 = arith.constant 0 : index
      %44 = memref.load %arg8[%c0_21] : memref<1xf32, #tpu.memory_space<smem>>
      %45 = vector.broadcast %44 : f32 to vector<128x1xf32>
      %46 = arith.mulf %45, %42 : vector<128x1xf32>
      %47 = vector.broadcast %46 : vector<128x1xf32> to vector<128x32xf32>
      %48 = arith.mulf %43, %47 : vector<128x32xf32>
      %c0_22 = arith.constant 0 : index
      %c0_23 = arith.constant 0 : index
      %c0_24 = arith.constant 0 : index
      %49 = vector.load %arg3[%c0_22, %c0_23, %c0_24] : memref<1x128x32xf32, #tpu.memory_space<vmem>>, vector<1x128x32xf32>
      %50 = vector.shape_cast %49 : vector<1x128x32xf32> to vector<128x32xf32>
      %51 = arith.addf %48, %50 : vector<128x32xf32>
      %c0_25 = arith.constant 0 : index
      %c0_26 = arith.constant 0 : index
      %c0_27 = arith.constant 0 : index
      %52 = vector.load %arg9[%c0_25, %c0_26, %c0_27] : memref<1x128x32xf32, #tpu.memory_space<vmem>>, vector<1x128x32xf32>
      %53 = vector.shape_cast %52 : vector<1x128x32xf32> to vector<128x32xf32>
      %54 = vector.shape_cast %51 : vector<128x32xf32> to vector<1x128x32xf32>
      tpu.vector_store %arg9[%c0_25, %c0_26, %c0_27], %54 {strides = array<i32>} : memref<1x128x32xf32, #tpu.memory_space<vmem>>, vector<1x128x32xf32>,
    } else {
    }
    return
  }
  func.func @transform_0(%arg0: i32, %arg1: i32, %arg2: i32) -> (i32, i32, i32) {
    %c0_i32 = arith.constant 0 : i32
    %c0_i32_0 = arith.constant 0 : i32
    return %arg0, %arg1, %c0_i32 : i32, i32, i32
  }
  func.func @transform_1(%arg0: i32, %arg1: i32, %arg2: i32) -> (i32, i32, i32) {
    %c0_i32 = arith.constant 0 : i32
    %c0_i32_0 = arith.constant 0 : i32
    %c0_i32_1 = arith.constant 0 : i32
    return %arg0, %c0_i32, %c0_i32_0 : i32, i32, i32
  }
  func.func @transform_2(%arg0: i32, %arg1: i32, %arg2: i32) -> (i32, i32, i32) {
    %c0_i32 = arith.constant 0 : i32
    %c0_i32_0 = arith.constant 0 : i32
    %c0_i32_1 = arith.constant 0 : i32
    return %arg0, %c0_i32, %c0_i32_0 : i32, i32, i32
  }
  func.func @transform_3(%arg0: i32, %arg1: i32, %arg2: i32) -> (i32, i32) {
    %c0_i32 = arith.constant 0 : i32
    %c0_i32_0 = arith.constant 0 : i32
    %c0_i32_1 = arith.constant 0 : i32
    return %c0_i32, %c0_i32_0 : i32, i32
  }
  func.func @transform_4(%arg0: i32, %arg1: i32, %arg2: i32) -> (i32, i32) {
    %c0_i32 = arith.constant 0 : i32
    %c0_i32_0 = arith.constant 0 : i32
    %c0_i32_1 = arith.constant 0 : i32
    return %c0_i32, %c0_i32_0 : i32, i32
  }
  func.func @transform_5(%arg0: i32, %arg1: i32, %arg2: i32) -> i32 {
    %c0_i32 = arith.constant 0 : i32
    %c0_i32_0 = arith.constant 0 : i32
    return %c0_i32 : i32
  }
  func.func @transform_6(%arg0: i32, %arg1: i32, %arg2: i32) -> (i32, i32, i32) {
    %c0_i32 = arith.constant 0 : i32
    %c0_i32_0 = arith.constant 0 : i32
    return %arg0, %arg1, %c0_i32 : i32, i32, i32
  }
}

</mosaic_0001>

<llo_original>
// kernel: tpu_custom_call.1
$region0: #{tpu_custom_call.1}
  #allocation0 [shape = 'u32[]', space=smem, size = 0x4, offset = 0x4, fixed_abs, tag = 'smem constant byte address 0x4 - core index']
  #allocation1 [shape = 'u32[144,128]{1,0:T(1,128)}', space=vmem, size = 0x12000, scoped, tag = 'internal scratch']
  #allocation2 [shape = 'bf16[128,4]{1,0:T(8,128)(2,1)}', space=vmem, size = 0x8000, scoped, tag = 'scratch operand']
  #allocation3 [shape = 'f32[128,1]{1,0:T(8,128)}', space=vmem, size = 0x10000, scoped, tag = 'scratch operand']
  #allocation4 [shape = 'f32[128,33]{1,0:T(8,128)}', space=vmem, size = 0x10000, scoped, tag = 'scratch operand']
  #allocation5 [shape = 'f32[1]{0:T(128)S(6)}', space=smem, size = 0x200, scoped, tag = 'scoped memory for tpu_custom_call.1']
  %s0 = inlined_call_operand.vmem [shape: f32[2,256,32], index: 0, kind: input, shape index: {}]
  %s1 = inlined_call_operand.vmem [shape: bf16[2,256,4], index: 1, kind: input, shape index: {}]
  %s2 = inlined_call_operand.vmem [shape: bf16[2,256,33], index: 2, kind: input, shape index: {}]
  %s3 = inlined_call_operand.vmem [shape: bf16[32,4], index: 3, kind: input, shape index: {}]
  %s4 = inlined_call_operand.vmem [shape: f32[1,4], index: 4, kind: input, shape index: {}]
  %s5 = inlined_call_operand.<no memory space> [shape: f32[1], index: 5, kind: input, shape index: {}]
  %s6 = inlined_call_operand.vmem [shape: f32[2,256,32], index: 6, kind: output, shape index: {}]
  %s7 = sld [smem:[#allocation0]]
  $region65: #{tpu_custom_call.1} parent=0
    _
  %s9 = ssub.s32 1, %s7
  %s10 = scalar_select 0, %s9, %s7
  %11 = sst [smem:[#allocation5]] %s5
  loop: start=0, step=1, limit=6
  $region2: #{tpu_custom_call.1} parent=0 // loop_pre_header
    _
  $region3: #{tpu_custom_call.1} parent=0 // loop_header
    %s13 = sphi 0, %s17
    %p14 = scmp.ge.s32.totalorder %s13, 6
    %s20 = sphi 0, %s39
    %s21 = sphi 0, %s35
    %s22 = sphi 0, %s31
    %s23 = sphi 0, %s20
    %s24 = sphi 0, %s21
    %s25 = sphi 0, %s22
    %s26 = sphi 0, %s23
    %s27 = sphi 0, %s24
    %s28 = sphi 0, %s25
    %s44 = sphi 0, %s46
    %s47 = sphi 0, %s44
    %s48 = sphi 0, %s47
    %s64 = sphi 0, %s48
    %s70 = sphi 0, %s72
    %s73 = sphi 0, %s70
    %s74 = sphi 0, %s73
    %s90 = sphi 0, %s74
    %s96 = sphi 0, %s98
    %s99 = sphi 0, %s96
    %s100 = sphi 0, %s99
    %s116 = sphi 0, %s100
    %s120 = sphi 0, %s120
    %s122 = sphi 0, %s120
    %s123 = sphi 0, %s122
    %s137 = sphi 0, %s123
    %s141 = sphi 0, %s141
    %s143 = sphi 0, %s141
    %s144 = sphi 0, %s143
    %s158 = sphi 0, %s144
    %s162 = sphi 0, %s162
    %s164 = sphi 0, %s162
    %s165 = sphi 0, %s164
    %s179 = sphi 0, %s165
    %s187 = sphi 0, %s189
    %s190 = sphi 0, %s187
    %s191 = sphi 0, %s190
    %s207 = sphi 0, %s191
  $region4: #{tpu_custom_call.1} parent=0 // loop_header_branch
    %16 = sbr.rel (%p14) target = $region8
  $region5: #{tpu_custom_call.1} parent=0 // loop_body
    %s18 = ssub.s32 %s13, 1
    %s19 = ssub.s32 %s13, 2
    %s29 = sadd.s32 1, %s22
    %p30 = scmp.ge.s32.totalorder %s29, 1
    %s31 = scalar_select %p30, 0, %s29
    %s32 = sadd.s32 1, %s21
    %s33 = scalar_select %p30, %s32, %s21
    %p34 = scmp.ge.s32.totalorder %s33, 2
    %s35 = scalar_select %p34, 0, %s33
    %s36 = sadd.s32 1, %s20
    %s37 = scalar_select %p34, %s36, %s20
    %p38 = scmp.ge.s32.totalorder %s37, 2
    %s39 = scalar_select %p38, 0, %s37
    %s40 = ssub.s32 %s20, %s39
    %s41 = ssub.s32 %s21, %s35
    %s42 = sor.u32 %s40, %s41
    %p43 = scmp.eq.s32.totalorder %s42, 0
    %s45 = sadd.s32 %s44, 1
    %s46 = scalar_select %p43, %s44, %s45
    %p49 = pneg %p43
    %p50 = scmp.eq.s32.totalorder %s13, 3
    %p51 = por %p49, %p50
    %p52 = scmp.ne.s32.totalorder %s44, %s47
    %p53 = scmp.eq.s32.totalorder %s13, 0
    %p54 = por %p52, %p53
    %p55 = scmp.ne.s32.totalorder %s44, %s47
    %p56 = scmp.eq.s32.totalorder %s18, 3
    %p57 = por %p55, %p56
    %p58 = scmp.ne.s32.totalorder %s47, %s48
    %p59 = scmp.eq.s32.totalorder %s18, 0
    %p60 = por %p58, %p59
    %p61 = scmp.ne.s32.totalorder %s47, %s48
    %p62 = scmp.eq.s32.totalorder %s19, 3
    %p63 = por %p61, %p62
    %p65 = scmp.ne.s32.totalorder %s48, %s64
    %p66 = scmp.eq.s32.totalorder %s19, 0
    %p67 = por %p65, %p66
    %s68 = ssub.s32 %s20, %s39
    %p69 = scmp.eq.s32.totalorder %s68, 0
    %s71 = sadd.s32 %s70, 1
    %s72 = scalar_select %p69, %s70, %s71
    %p75 = pneg %p69
    %p76 = scmp.eq.s32.totalorder %s13, 3
    %p77 = por %p75, %p76
    %p78 = scmp.ne.s32.totalorder %s70, %s73
    %p79 = scmp.eq.s32.totalorder %s13, 0
    %p80 = por %p78, %p79
    %p81 = scmp.ne.s32.totalorder %s70, %s73
    %p82 = scmp.eq.s32.totalorder %s18, 3
    %p83 = por %p81, %p82
    %p84 = scmp.ne.s32.totalorder %s73, %s74
    %p85 = scmp.eq.s32.totalorder %s18, 0
    %p86 = por %p84, %p85
    %p87 = scmp.ne.s32.totalorder %s73, %s74
    %p88 = scmp.eq.s32.totalorder %s19, 3
    %p89 = por %p87, %p88
    %p91 = scmp.ne.s32.totalorder %s74, %s90
    %p92 = scmp.eq.s32.totalorder %s19, 0
    %p93 = por %p91, %p92
    %s94 = ssub.s32 %s20, %s39
    %p95 = scmp.eq.s32.totalorder %s94, 0
    %s97 = sadd.s32 %s96, 1
    %s98 = scalar_select %p95, %s96, %s97
    %p101 = pneg %p95
    %p102 = scmp.eq.s32.totalorder %s13, 3
    %p103 = por %p101, %p102
    %p104 = scmp.ne.s32.totalorder %s96, %s99
    %p105 = scmp.eq.s32.totalorder %s13, 0
    %p106 = por %p104, %p105
    %p107 = scmp.ne.s32.totalorder %s96, %s99
    %p108 = scmp.eq.s32.totalorder %s18, 3
    %p109 = por %p107, %p108
    %p110 = scmp.ne.s32.totalorder %s99, %s100
    %p111 = scmp.eq.s32.totalorder %s18, 0
    %p112 = por %p110, %p111
    %p113 = scmp.ne.s32.totalorder %s99, %s100
    %p114 = scmp.eq.s32.totalorder %s19, 3
    %p115 = por %p113, %p114
    %p117 = scmp.ne.s32.totalorder %s100, %s116
    %p118 = scmp.eq.s32.totalorder %s19, 0
    %p119 = por %p117, %p118
    %s121 = sadd.s32 %s120, 1
    %p124 = scmp.eq.s32.totalorder %s13, 3
    %p125 = scmp.ne.s32.totalorder %s120, %s122
    %p126 = scmp.eq.s32.totalorder %s13, 0
    %p127 = por %p125, %p126
    %p128 = scmp.ne.s32.totalorder %s120, %s122
    %p129 = scmp.eq.s32.totalorder %s18, 3
    %p130 = por %p128, %p129
    %p131 = scmp.ne.s32.totalorder %s122, %s123
    %p132 = scmp.eq.s32.totalorder %s18, 0
    %p133 = por %p131, %p132
    %p134 = scmp.ne.s32.totalorder %s122, %s123
    %p135 = scmp.eq.s32.totalorder %s19, 3
    %p136 = por %p134, %p135
    %p138 = scmp.ne.s32.totalorder %s123, %s137
    %p139 = scmp.eq.s32.totalorder %s19, 0
    %p140 = por %p138, %p139
    %s142 = sadd.s32 %s141, 1
    %p145 = scmp.eq.s32.totalorder %s13, 3
    %p146 = scmp.ne.s32.totalorder %s141, %s143
    %p147 = scmp.eq.s32.totalorder %s13, 0
    %p148 = por %p146, %p147
    %p149 = scmp.ne.s32.totalorder %s141, %s143
    %p150 = scmp.eq.s32.totalorder %s18, 3
    %p151 = por %p149, %p150
    %p152 = scmp.ne.s32.totalorder %s143, %s144
    %p153 = scmp.eq.s32.totalorder %s18, 0
    %p154 = por %p152, %p153
    %p155 = scmp.ne.s32.totalorder %s143, %s144
    %p156 = scmp.eq.s32.totalorder %s19, 3
    %p157 = por %p155, %p156
    %p159 = scmp.ne.s32.totalorder %s144, %s158
    %p160 = scmp.eq.s32.totalorder %s19, 0
    %p161 = por %p159, %p160
    %s163 = sadd.s32 %s162, 1
    %p166 = scmp.eq.s32.totalorder %s13, 3
    %p167 = scmp.ne.s32.totalorder %s162, %s164
    %p168 = scmp.eq.s32.totalorder %s13, 0
    %p169 = por %p167, %p168
    %p170 = scmp.ne.s32.totalorder %s162, %s164
    %p171 = scmp.eq.s32.totalorder %s18, 3
    %p172 = por %p170, %p171
    %p173 = scmp.ne.s32.totalorder %s164, %s165
    %p174 = scmp.eq.s32.totalorder %s18, 0
    %p175 = por %p173, %p174
    %p176 = scmp.ne.s32.totalorder %s164, %s165
    %p177 = scmp.eq.s32.totalorder %s19, 3
    %p178 = por %p176, %p177
    %p180 = scmp.ne.s32.totalorder %s165, %s179
    %p181 = scmp.eq.s32.totalorder %s19, 0
    %p182 = por %p180, %p181
    %s183 = ssub.s32 %s20, %s39
    %s184 = ssub.s32 %s21, %s35
    %s185 = sor.u32 %s183, %s184
    %p186 = scmp.eq.s32.totalorder %s185, 0
    %s188 = sadd.s32 %s187, 1
    %s189 = scalar_select %p186, %s187, %s188
    %p192 = pneg %p186
    %p193 = scmp.eq.s32.totalorder %s13, 3
    %p194 = por %p192, %p193
    %p195 = scmp.ne.s32.totalorder %s187, %s190
    %p196 = scmp.eq.s32.totalorder %s13, 0
    %p197 = por %p195, %p196
    %p198 = scmp.ne.s32.totalorder %s187, %s190
    %p199 = scmp.eq.s32.totalorder %s18, 3
    %p200 = por %p198, %p199
    %p201 = scmp.ne.s32.totalorder %s190, %s191
    %p202 = scmp.eq.s32.totalorder %s18, 0
    %p203 = por %p201, %p202
    %p204 = scmp.ne.s32.totalorder %s190, %s191
    %p205 = scmp.eq.s32.totalorder %s19, 3
    %p206 = por %p204, %p205
    %p208 = scmp.ne.s32.totalorder %s191, %s207
    %p209 = scmp.eq.s32.totalorder %s19, 0
    %p210 = por %p208, %p209
    %p211 = scmp.le.s32.totalorder 1, %s13
    %p212 = scmp.lt.s32.totalorder %s13, 5
    %p213 = pnand %p211, %p212
    %p214 = pneg %p213
    // Predicated region
    $region9: #{tpu_custom_call.1} parent=5 // pred_check
      _
    $region10: #{tpu_custom_call.1} parent=5 // pred_check_branch
      %216 = sbr.rel (%p213) target = $region12
    $region11: #{tpu_custom_call.1} parent=5 // pred_region
      %s217 = ssub.s32 %s13, 1
      // Predicated region
      $region13: #{tpu_custom_call.1} parent=11 // pred_check
        %p218 = pneg %p133
      $region14: #{tpu_custom_call.1} parent=11 // pred_check_branch
        %220 = sbr.rel (%p218) target = $region16
      $region15: #{tpu_custom_call.1} parent=11 // pred_region
        _
      $region16: #{tpu_custom_call.1} parent=11 // pred_fallthru
        _
      // Predicated region
      $region17: #{tpu_custom_call.1} parent=11 // pred_check
        %p221 = pneg %p154
      $region18: #{tpu_custom_call.1} parent=11 // pred_check_branch
        %223 = sbr.rel (%p221) target = $region20
      $region19: #{tpu_custom_call.1} parent=11 // pred_region
        _
      $region20: #{tpu_custom_call.1} parent=11 // pred_fallthru
        _
      // Predicated region
      $region21: #{tpu_custom_call.1} parent=11 // pred_check
        %p224 = pneg %p175
      $region22: #{tpu_custom_call.1} parent=11 // pred_check_branch
        %226 = sbr.rel (%p224) target = $region24
      $region23: #{tpu_custom_call.1} parent=11 // pred_region
        _
      $region24: #{tpu_custom_call.1} parent=11 // pred_fallthru
        _
    $region12: #{tpu_custom_call.1} parent=5 // pred_fallthru
      _
    %p227 = scmp.lt.s32.totalorder %s13, 4
    // Predicated region
    $region25: #{tpu_custom_call.1} parent=5 // pred_check
      %p228 = pneg %p227
    $region26: #{tpu_custom_call.1} parent=5 // pred_check_branch
      %230 = sbr.rel (%p228) target = $region28
    $region27: #{tpu_custom_call.1} parent=5 // pred_region
      // Predicated region
      $region29: #{tpu_custom_call.1} parent=27 // pred_check
        %p231 = pneg %p54
      $region30: #{tpu_custom_call.1} parent=27 // pred_check_branch
        %233 = sbr.rel (%p231) target = $region32
      $region31: #{tpu_custom_call.1} parent=27 // pred_region
        %s234 = smul.u32 16, %s21
        %p235 = scmp.lt.s32.totalorder %s20, 1
        %s236 = scalar_select %p235, %s20, 1
        %p237 = scmp.lt.s32.totalorder %s234, 31
        %s238 = scalar_select %p237, %s234, 31
        %s239 = smul.addr %s236, 32
        %s240 = sadd.s32 %s238, %s239
        %s241 = smul.addr %s240, 8
        %s242 = scalar_lea.vmem %s0, %s241
        %s243 = smul.u32 16, %s21
      $region32: #{tpu_custom_call.1} parent=27 // pred_fallthru
        _
      // Predicated region
      $region33: #{tpu_custom_call.1} parent=27 // pred_check
        %p244 = pneg %p80
      $region34: #{tpu_custom_call.1} parent=27 // pred_check_branch
        %246 = sbr.rel (%p244) target = $region36
      $region35: #{tpu_custom_call.1} parent=27 // pred_region
        %p247 = scmp.lt.s32.totalorder %s20, 1
        %s248 = scalar_select %p247, %s20, 1
        %s249 = smul.addr %s248, 32
        %s250 = smul.addr %s249, 4
        %s251 = scalar_lea.vmem %s1, %s250
      $region36: #{tpu_custom_call.1} parent=27 // pred_fallthru
        _
      // Predicated region
      $region37: #{tpu_custom_call.1} parent=27 // pred_check
        %p252 = pneg %p106
      $region38: #{tpu_custom_call.1} parent=27 // pred_check_branch
        %254 = sbr.rel (%p252) target = $region40
      $region39: #{tpu_custom_call.1} parent=27 // pred_region
        %p255 = scmp.lt.s32.totalorder %s20, 1
        %s256 = scalar_select %p255, %s20, 1
        %s257 = smul.addr %s256, 32
        %s258 = smul.addr %s257, 4
        %s259 = scalar_lea.vmem %s2, %s258
      $region40: #{tpu_custom_call.1} parent=27 // pred_fallthru
        _
    $region28: #{tpu_custom_call.1} parent=5 // pred_fallthru
      _
    %p260 = scmp.le.s32.totalorder 1, %s13
    %p261 = scmp.lt.s32.totalorder %s13, 5
    %p262 = pnand %p260, %p261
    %p263 = pneg %p262
    // Predicated region
    $region41: #{tpu_custom_call.1} parent=5 // pred_check
      _
    $region42: #{tpu_custom_call.1} parent=5 // pred_check_branch
      %265 = sbr.rel (%p262) target = $region44
    $region43: #{tpu_custom_call.1} parent=5 // pred_region
      %s266 = ssub.s32 %s13, 1
      %s267 = smul.u32 16, %s24
      %p268 = scmp.lt.s32.totalorder %s23, 1
      %s269 = scalar_select %p268, %s23, 1
      %p270 = scmp.lt.s32.totalorder %s267, 31
      %s271 = scalar_select %p270, %s267, 31
      %s272 = smul.addr %s269, 32
      %s273 = sadd.s32 %s271, %s272
      %s274 = smul.addr %s273, 8
      %s275 = scalar_lea.vmem %s0, %s274
      %p276 = pneg %p60
      %p277 = pneg %p57
      %p278 = scmp.lt.s32.totalorder %s23, 1
      %s279 = scalar_select %p278, %s23, 1
      %s280 = smul.addr %s279, 32
      %s281 = smul.addr %s280, 4
      %s282 = scalar_lea.vmem %s1, %s281
      %p283 = pneg %p86
      %p284 = pneg %p83
      %p285 = scmp.lt.s32.totalorder %s23, 1
      %s286 = scalar_select %p285, %s23, 1
      %s287 = smul.addr %s286, 32
      %s288 = smul.addr %s287, 4
      %s289 = scalar_lea.vmem %s2, %s288
      %p290 = pneg %p112
      %p291 = pneg %p109
      %p292 = pneg %p133
      %p293 = pneg %p130
      %p294 = pneg %p154
      %p295 = pneg %p151
      %p296 = pneg %p175
      %p297 = pneg %p172
      %p298 = pneg %p203
      %p299 = pneg %p200
      %s300 = smul.u32 16, %s24
      %p301 = scmp.lt.s32.totalorder %s23, 1
      %s302 = scalar_select %p301, %s23, 1
      %p303 = scmp.lt.s32.totalorder %s300, 31
      %s304 = scalar_select %p303, %s300, 31
      %s305 = smul.addr %s302, 32
      %s306 = sadd.s32 %s304, %s305
      %s307 = smul.addr %s306, 8
      %s308 = scalar_lea.vmem %s6, %s307
      %s309 = smul.u32 16, %s24
      %p310 = scmp.lt.s32.totalorder %s23, 1
      %s311 = scalar_select %p310, %s23, 1
      %p312 = scmp.lt.s32.totalorder %s309, 31
      %s313 = scalar_select %p312, %s309, 31
      %s314 = smul.addr %s311, 32
      %s315 = sadd.s32 %s313, %s314
      %s316 = smul.addr %s315, 8
      %s317 = scalar_lea.vmem %s0, %s316
      %s318 = smul.u32 16, %s24
      %p319 = scmp.lt.s32.totalorder %s23, 1
      %s320 = scalar_select %p319, %s23, 1
      %s321 = smul.addr %s320, 32
      %s322 = smul.addr %s321, 4
      %s323 = scalar_lea.vmem %s1, %s322
      %p324 = scmp.lt.s32.totalorder %s23, 1
      %s325 = scalar_select %p324, %s23, 1
      %s326 = smul.addr %s325, 32
      %s327 = smul.addr %s326, 4
      %s328 = scalar_lea.vmem %s2, %s327
      %s329 = smul.u32 16, %s24
      %p330 = scmp.lt.s32.totalorder %s23, 1
      %s331 = scalar_select %p330, %s23, 1
      %p332 = scmp.lt.s32.totalorder %s329, 31
      %s333 = scalar_select %p332, %s329, 31
      %s334 = smul.addr %s331, 32
      %s335 = sadd.s32 %s333, %s334
      %s336 = smul.addr %s335, 8
      %s337 = scalar_lea.vmem %s6, %s336
      %s338 = smul.u32 16, %s24
      %p340 = scmp.eq.s32.totalorder %s25, 0
      // Predicated region
      $region45: #{tpu_custom_call.1} parent=43 // pred_check
        %p341 = pneg %p340
      $region46: #{tpu_custom_call.1} parent=43 // pred_check_branch
        %343 = sbr.rel (%p341) target = $region48
      $region47: #{tpu_custom_call.1} parent=43 // pred_region
        %v344 = vld [vmem:[%s317] sm:$0xff]
        %v345 = vld [vmem:[%s317 + $0x8] sm:$0xff]
        %v346 = vld [vmem:[%s317 + $0x10] sm:$0xff]
        %v347 = vld [vmem:[%s317 + $0x18] sm:$0xff]
        %v348 = vld [vmem:[%s317 + $0x20] sm:$0xff]
        %v349 = vld [vmem:[%s317 + $0x28] sm:$0xff]
        %v350 = vld [vmem:[%s317 + $0x30] sm:$0xff]
        %v351 = vld [vmem:[%s317 + $0x38] sm:$0xff]
        %v352 = vld [vmem:[%s317 + $0x40] sm:$0xff]
        %v353 = vld [vmem:[%s317 + $0x48] sm:$0xff]
        %v354 = vld [vmem:[%s317 + $0x50] sm:$0xff]
        %v355 = vld [vmem:[%s317 + $0x58] sm:$0xff]
        %v356 = vld [vmem:[%s317 + $0x60] sm:$0xff]
        %v357 = vld [vmem:[%s317 + $0x68] sm:$0xff]
        %v358 = vld [vmem:[%s317 + $0x70] sm:$0xff]
        %v359 = vld [vmem:[%s317 + $0x78] sm:$0xff]
        %v360 = vpack.c.bf16 %v345, %v344
        %v361 = vpack.c.bf16 %v347, %v346
        %v362 = vpack.c.bf16 %v349, %v348
        %v363 = vpack.c.bf16 %v351, %v350
        %v364 = vpack.c.bf16 %v353, %v352
        %v365 = vpack.c.bf16 %v355, %v354
        %v366 = vpack.c.bf16 %v357, %v356
        %v367 = vpack.c.bf16 %v359, %v358
        %v368 = vld [vmem:[%s3] sm:$0xf]
        %v369 = vld [vmem:[%s3 + $0x4] sm:$0xf]
        %v370 = vld [vmem:[%s3 + $0x8] sm:$0xf]
        %v371 = vld [vmem:[%s3 + $0xc] sm:$0xf]
        %v372 = vld [vmem:[%s4] sm:$0x1]
        %v374 = vlaneseq
        %v375 = vshrl.u32 %v374, 7
        %v376 = vsub.s32 0, %v375
        %v377 = vrot.slane %v372, %v376
        %v383 = vunpack.c.l.b16 %v368
        %v384 = vunpack.c.l.b16 %v369
        %v385 = vunpack.c.l.b16 %v370
        %v386 = vunpack.c.l.b16 %v371
        %v387 = vpack.c.b16 %v384, %v383
        %v388 = vpack.c.b16 %v386, %v385
        %vm391 = vcmask 261120
        %v393 = vsel %vm391, %v360, 0
        %v396 = vsel %vm391, %v361, 0
        %v399 = vsel %vm391, %v362, 0
        %v402 = vsel %vm391, %v363, 0
        %v405 = vsel %vm391, %v364, 0
        %v408 = vsel %vm391, %v365, 0
        %v411 = vsel %vm391, %v366, 0
        %v414 = vsel %vm391, %v367, 0
        %416 = vmatprep.subr.bf16.mxu0 0
        %417 = vmatpush1.bf16.msra.mxu0 0
        %418 = vmatprep.subr.bf16.mxu0 0
        %419 = vmatpush1.bf16.msra.mxu0 0
        %420 = vmatprep.subr.bf16.mxu0 0
        %421 = vmatpush1.bf16.msra.mxu0 0
        %422 = vmatprep.subr.bf16.mxu0 0
        %423 = vmatpush1.bf16.msra.mxu0 0
        %424 = vmatprep.subr.bf16.mxu0 0
        %425 = vmatpush1.bf16.msra.mxu0 0
        %426 = vmatprep.subr.bf16.mxu0 0
        %427 = vmatpush1.bf16.msra.mxu0 0
        %428 = vmatprep.subr.bf16.mxu0 0
        %429 = vmatpush1.bf16.msra.mxu0 %v388
        %430 = vmatprep.subr.bf16.mxu0 0
        %431 = vmatpush1.bf16.msra.mxu0 %v387
        %432 = vmatprep.subr.bf16.mxu0 0
        %433 = vmatpush2.bf16.msra.mxu0 0
        %434 = vmatprep.subr.bf16.mxu0 0
        %435 = vmatpush2.bf16.msra.mxu0 0
        %436 = vmatprep.subr.bf16.mxu0 0
        %437 = vmatpush2.bf16.msra.mxu0 0
        %438 = vmatprep.subr.bf16.mxu0 0
        %439 = vmatpush2.bf16.msra.mxu0 0
        %440 = vmatprep.subr.bf16.mxu0 0
        %441 = vmatpush2.bf16.msra.mxu0 0
        %442 = vmatprep.subr.bf16.mxu0 0
        %443 = vmatpush2.bf16.msra.mxu0 0
        %444 = vmatprep.subr.bf16.mxu0 0
        %445 = vmatpush2.bf16.msra.mxu0 0
        %446 = vmatprep.subr.bf16.mxu0 0
        %447 = vmatpush2.bf16.msra.mxu0 0
        %448 = vmatprep.mubr.bf16.mxu0 0
        %449 = vmatmul.mubr.bf16.gmra.mxu0 %v393
        %v450 = vpop.f32.mrf.mxu0
        %v451 = vadd.f32 %v377, %v450
        %v452 = vpop.f32.mrf.mxu0
        %v453 = vpop.f32.mrf.mxu0
        %v454 = vadd.f32 %v377, %v453
        %v455 = vpop.f32.mrf.mxu0
        %456 = vmatprep.mubr.bf16.mxu0 0
        %457 = vmatmul.mubr.bf16.gmra.mxu0 %v396
        %v458 = vpop.f32.mrf.mxu0
        %v459 = vadd.f32 %v377, %v458
        %v460 = vpop.f32.mrf.mxu0
        %v461 = vpop.f32.mrf.mxu0
        %v462 = vadd.f32 %v377, %v461
        %v463 = vpop.f32.mrf.mxu0
        %464 = vmatprep.mubr.bf16.mxu0 0
        %465 = vmatmul.mubr.bf16.gmra.mxu0 %v399
        %v466 = vpop.f32.mrf.mxu0
        %v467 = vadd.f32 %v377, %v466
        %v468 = vpop.f32.mrf.mxu0
        %v469 = vpop.f32.mrf.mxu0
        %v470 = vadd.f32 %v377, %v469
        %v471 = vpop.f32.mrf.mxu0
        %472 = vmatprep.mubr.bf16.mxu0 0
        %473 = vmatmul.mubr.bf16.gmra.mxu0 %v402
        %v474 = vpop.f32.mrf.mxu0
        %v475 = vadd.f32 %v377, %v474
        %v476 = vpop.f32.mrf.mxu0
        %v477 = vpop.f32.mrf.mxu0
        %v478 = vadd.f32 %v377, %v477
        %v479 = vpop.f32.mrf.mxu0
        %480 = vmatprep.mubr.bf16.mxu0 0
        %481 = vmatmul.mubr.bf16.gmra.mxu0 %v405
        %v482 = vpop.f32.mrf.mxu0
        %v483 = vadd.f32 %v377, %v482
        %v484 = vpop.f32.mrf.mxu0
        %v485 = vpop.f32.mrf.mxu0
        %v486 = vadd.f32 %v377, %v485
        %v487 = vpop.f32.mrf.mxu0
        %488 = vmatprep.mubr.bf16.mxu0 0
        %489 = vmatmul.mubr.bf16.gmra.mxu0 %v408
        %v490 = vpop.f32.mrf.mxu0
        %v491 = vadd.f32 %v377, %v490
        %v492 = vpop.f32.mrf.mxu0
        %v493 = vpop.f32.mrf.mxu0
        %v494 = vadd.f32 %v377, %v493
        %v495 = vpop.f32.mrf.mxu0
        %496 = vmatprep.mubr.bf16.mxu0 0
        %497 = vmatmul.mubr.bf16.gmra.mxu0 %v411
        %v498 = vpop.f32.mrf.mxu0
        %v499 = vadd.f32 %v377, %v498
        %v500 = vpop.f32.mrf.mxu0
        %v501 = vpop.f32.mrf.mxu0
        %v502 = vadd.f32 %v377, %v501
        %v503 = vpop.f32.mrf.mxu0
        %504 = vmatprep.mubr.bf16.mxu0 0
        %505 = vmatmul.mubr.bf16.gmra.mxu0 %v414
        %v506 = vpop.f32.mrf.mxu0
        %v507 = vadd.f32 %v377, %v506
        %v508 = vpop.f32.mrf.mxu0
        %v509 = vpop.f32.mrf.mxu0
        %v510 = vadd.f32 %v377, %v509
        %v511 = vpop.f32.mrf.mxu0
        %512 = vdwg.mxu0
        %v513 = vpack.c.bf16 %v454, %v451
        %v514 = vpack.c.bf16 %v462, %v459
        %v515 = vpack.c.bf16 %v470, %v467
        %v516 = vpack.c.bf16 %v478, %v475
        %v517 = vpack.c.bf16 %v486, %v483
        %v518 = vpack.c.bf16 %v494, %v491
        %v519 = vpack.c.bf16 %v502, %v499
        %v520 = vpack.c.bf16 %v510, %v507
        %v529 = vunpack.c.l.b16 %v513
        %v530 = vunpack.c.h.b16 %v513
        %v531 = vunpack.c.l.b16 %v514
        %v532 = vunpack.c.h.b16 %v514
        %v533 = vunpack.c.l.b16 %v515
        %v534 = vunpack.c.h.b16 %v515
        %v535 = vunpack.c.l.b16 %v516
        %v536 = vunpack.c.h.b16 %v516
        %v537 = vunpack.c.l.b16 %v517
        %v538 = vunpack.c.h.b16 %v517
        %v539 = vunpack.c.l.b16 %v518
        %v540 = vunpack.c.h.b16 %v518
        %v541 = vunpack.c.l.b16 %v519
        %v542 = vunpack.c.h.b16 %v519
        %v543 = vunpack.c.l.b16 %v520
        %v544 = vunpack.c.h.b16 %v520
        %v545 = vpack.c.b16 %v529, %v529
        %v546 = vpack.c.b16 %v530, %v530
        %v547 = vpack.c.b16 %v531, %v531
        %v548 = vpack.c.b16 %v532, %v532
        %v549 = vpack.c.b16 %v533, %v533
        %v550 = vpack.c.b16 %v534, %v534
        %v551 = vpack.c.b16 %v535, %v535
        %v552 = vpack.c.b16 %v536, %v536
        %v553 = vpack.c.b16 %v537, %v537
        %v554 = vpack.c.b16 %v538, %v538
        %v555 = vpack.c.b16 %v539, %v539
        %v556 = vpack.c.b16 %v540, %v540
        %v557 = vpack.c.b16 %v541, %v541
        %v558 = vpack.c.b16 %v542, %v542
        %v559 = vpack.c.b16 %v543, %v543
        %v560 = vpack.c.b16 %v544, %v544
        %vm577 = vcmask 27648
        %578 = vst.msk [vmem:[#allocation2] sm:$0xf] %vm577, %v545
        %579 = vst.msk [vmem:[#allocation2 + $0x4] sm:$0xf] %vm577, %v546
        %580 = vst.msk [vmem:[#allocation2 + $0x8] sm:$0xf] %vm577, %v547
        %581 = vst.msk [vmem:[#allocation2 + $0xc] sm:$0xf] %vm577, %v548
        %582 = vst.msk [vmem:[#allocation2 + $0x10] sm:$0xf] %vm577, %v549
        %583 = vst.msk [vmem:[#allocation2 + $0x14] sm:$0xf] %vm577, %v550
        %584 = vst.msk [vmem:[#allocation2 + $0x18] sm:$0xf] %vm577, %v551
        %585 = vst.msk [vmem:[#allocation2 + $0x1c] sm:$0xf] %vm577, %v552
        %586 = vst.msk [vmem:[#allocation2 + $0x20] sm:$0xf] %vm577, %v553
        %587 = vst.msk [vmem:[#allocation2 + $0x24] sm:$0xf] %vm577, %v554
        %588 = vst.msk [vmem:[#allocation2 + $0x28] sm:$0xf] %vm577, %v555
        %589 = vst.msk [vmem:[#allocation2 + $0x2c] sm:$0xf] %vm577, %v556
        %590 = vst.msk [vmem:[#allocation2 + $0x30] sm:$0xf] %vm577, %v557
        %591 = vst.msk [vmem:[#allocation2 + $0x34] sm:$0xf] %vm577, %v558
        %592 = vst.msk [vmem:[#allocation2 + $0x38] sm:$0xf] %vm577, %v559
        %593 = vst.msk [vmem:[#allocation2 + $0x3c] sm:$0xf] %vm577, %v560
        %vm594 = vcmask 7168
        %595 = vst.msk [vmem:[#allocation3] sm:$0xff] %vm594, -1e+30
        %596 = vst.msk [vmem:[#allocation3 + $0x8] sm:$0xff] %vm594, -1e+30
        %597 = vst.msk [vmem:[#allocation3 + $0x10] sm:$0xff] %vm594, -1e+30
        %598 = vst.msk [vmem:[#allocation3 + $0x18] sm:$0xff] %vm594, -1e+30
        %599 = vst.msk [vmem:[#allocation3 + $0x20] sm:$0xff] %vm594, -1e+30
        %600 = vst.msk [vmem:[#allocation3 + $0x28] sm:$0xff] %vm594, -1e+30
        %601 = vst.msk [vmem:[#allocation3 + $0x30] sm:$0xff] %vm594, -1e+30
        %602 = vst.msk [vmem:[#allocation3 + $0x38] sm:$0xff] %vm594, -1e+30
        %603 = vst.msk [vmem:[#allocation3 + $0x40] sm:$0xff] %vm594, -1e+30
        %604 = vst.msk [vmem:[#allocation3 + $0x48] sm:$0xff] %vm594, -1e+30
        %605 = vst.msk [vmem:[#allocation3 + $0x50] sm:$0xff] %vm594, -1e+30
        %606 = vst.msk [vmem:[#allocation3 + $0x58] sm:$0xff] %vm594, -1e+30
        %607 = vst.msk [vmem:[#allocation3 + $0x60] sm:$0xff] %vm594, -1e+30
        %608 = vst.msk [vmem:[#allocation3 + $0x68] sm:$0xff] %vm594, -1e+30
        %609 = vst.msk [vmem:[#allocation3 + $0x70] sm:$0xff] %vm594, -1e+30
        %610 = vst.msk [vmem:[#allocation3 + $0x78] sm:$0xff] %vm594, -1e+30
        %vm611 = vcmask 269312
        %612 = vst.msk [vmem:[#allocation4] sm:$0xff] %vm611, 0.0
        %613 = vst.msk [vmem:[#allocation4 + $0x8] sm:$0xff] %vm611, 0.0
        %614 = vst.msk [vmem:[#allocation4 + $0x10] sm:$0xff] %vm611, 0.0
        %615 = vst.msk [vmem:[#allocation4 + $0x18] sm:$0xff] %vm611, 0.0
        %616 = vst.msk [vmem:[#allocation4 + $0x20] sm:$0xff] %vm611, 0.0
        %617 = vst.msk [vmem:[#allocation4 + $0x28] sm:$0xff] %vm611, 0.0
        %618 = vst.msk [vmem:[#allocation4 + $0x30] sm:$0xff] %vm611, 0.0
        %619 = vst.msk [vmem:[#allocation4 + $0x38] sm:$0xff] %vm611, 0.0
        %620 = vst.msk [vmem:[#allocation4 + $0x40] sm:$0xff] %vm611, 0.0
        %621 = vst.msk [vmem:[#allocation4 + $0x48] sm:$0xff] %vm611, 0.0
        %622 = vst.msk [vmem:[#allocation4 + $0x50] sm:$0xff] %vm611, 0.0
        %623 = vst.msk [vmem:[#allocation4 + $0x58] sm:$0xff] %vm611, 0.0
        %624 = vst.msk [vmem:[#allocation4 + $0x60] sm:$0xff] %vm611, 0.0
        %625 = vst.msk [vmem:[#allocation4 + $0x68] sm:$0xff] %vm611, 0.0
        %626 = vst.msk [vmem:[#allocation4 + $0x70] sm:$0xff] %vm611, 0.0
        %627 = vst.msk [vmem:[#allocation4 + $0x78] sm:$0xff] %vm611, 0.0
      $region48: #{tpu_custom_call.1} parent=43 // pred_fallthru
        _
      %s628 = smul.u32 %s25, 256
      %s629 = sshra.s32 %s628, 3
      %s630 = sand.u32 %s628, 7
      %s631 = smul.addr %s629, 4
      %s632 = scalar_lea.vmem %s323, %s631
      %v633 = vld [vmem:[%s632] sm:$0xf]
      %v634 = vld [vmem:[%s632 + $0x4] sm:$0xf]
      %v635 = vld [vmem:[%s632 + $0x8] sm:$0xf]
      %v636 = vld [vmem:[%s632 + $0xc] sm:$0xf]
      %v637 = vld [vmem:[%s632 + $0x10] sm:$0xf]
      %v638 = vld [vmem:[%s632 + $0x14] sm:$0xf]
      %v639 = vld [vmem:[%s632 + $0x18] sm:$0xf]
      %v640 = vld [vmem:[%s632 + $0x1c] sm:$0xf]
      %v641 = vld [vmem:[%s632 + $0x20] sm:$0xf]
      %v642 = vld [vmem:[%s632 + $0x24] sm:$0xf]
      %v643 = vld [vmem:[%s632 + $0x28] sm:$0xf]
      %v644 = vld [vmem:[%s632 + $0x2c] sm:$0xf]
      %v645 = vld [vmem:[%s632 + $0x30] sm:$0xf]
      %v646 = vld [vmem:[%s632 + $0x34] sm:$0xf]
      %v647 = vld [vmem:[%s632 + $0x38] sm:$0xf]
      %v648 = vld [vmem:[%s632 + $0x3c] sm:$0xf]
      %v649 = vld [vmem:[%s632 + $0x40] sm:$0xf]
      %v650 = vld [vmem:[%s632 + $0x44] sm:$0xf]
      %v651 = vld [vmem:[%s632 + $0x48] sm:$0xf]
      %v652 = vld [vmem:[%s632 + $0x4c] sm:$0xf]
      %v653 = vld [vmem:[%s632 + $0x50] sm:$0xf]
      %v654 = vld [vmem:[%s632 + $0x54] sm:$0xf]
      %v655 = vld [vmem:[%s632 + $0x58] sm:$0xf]
      %v656 = vld [vmem:[%s632 + $0x5c] sm:$0xf]
      %v657 = vld [vmem:[%s632 + $0x60] sm:$0xf]
      %v658 = vld [vmem:[%s632 + $0x64] sm:$0xf]
      %v659 = vld [vmem:[%s632 + $0x68] sm:$0xf]
      %v660 = vld [vmem:[%s632 + $0x6c] sm:$0xf]
      %v661 = vld [vmem:[%s632 + $0x70] sm:$0xf]
      %v662 = vld [vmem:[%s632 + $0x74] sm:$0xf]
      %v663 = vld [vmem:[%s632 + $0x78] sm:$0xf]
      %v664 = vld [vmem:[%s632 + $0x7c] sm:$0xf]
      %s665 = smul.addr %s629, 4
      %s666 = scalar_lea.vmem %s328, %s665
      %v667 = vld [vmem:[%s666] sm:$0xf]
      %v668 = vld [vmem:[%s666 + $0x4] sm:$0xf]
      %v669 = vld [vmem:[%s666 + $0x8] sm:$0xf]
      %v670 = vld [vmem:[%s666 + $0xc] sm:$0xf]
      %v671 = vld [vmem:[%s666 + $0x10] sm:$0xf]
      %v672 = vld [vmem:[%s666 + $0x14] sm:$0xf]
      %v673 = vld [vmem:[%s666 + $0x18] sm:$0xf]
      %v674 = vld [vmem:[%s666 + $0x1c] sm:$0xf]
      %v675 = vld [vmem:[%s666 + $0x20] sm:$0xf]
      %v676 = vld [vmem:[%s666 + $0x24] sm:$0xf]
      %v677 = vld [vmem:[%s666 + $0x28] sm:$0xf]
      %v678 = vld [vmem:[%s666 + $0x2c] sm:$0xf]
      %v679 = vld [vmem:[%s666 + $0x30] sm:$0xf]
      %v680 = vld [vmem:[%s666 + $0x34] sm:$0xf]
      %v681 = vld [vmem:[%s666 + $0x38] sm:$0xf]
      %v682 = vld [vmem:[%s666 + $0x3c] sm:$0xf]
      %v683 = vld [vmem:[%s666 + $0x40] sm:$0xf]
      %v684 = vld [vmem:[%s666 + $0x44] sm:$0xf]
      %v685 = vld [vmem:[%s666 + $0x48] sm:$0xf]
      %v686 = vld [vmem:[%s666 + $0x4c] sm:$0xf]
      %v687 = vld [vmem:[%s666 + $0x50] sm:$0xf]
      %v688 = vld [vmem:[%s666 + $0x54] sm:$0xf]
      %v689 = vld [vmem:[%s666 + $0x58] sm:$0xf]
      %v690 = vld [vmem:[%s666 + $0x5c] sm:$0xf]
      %v691 = vld [vmem:[%s666 + $0x60] sm:$0xf]
      %v692 = vld [vmem:[%s666 + $0x64] sm:$0xf]
      %v693 = vld [vmem:[%s666 + $0x68] sm:$0xf]
      %v694 = vld [vmem:[%s666 + $0x6c] sm:$0xf]
      %v695 = vld [vmem:[%s666 + $0x70] sm:$0xf]
      %v696 = vld [vmem:[%s666 + $0x74] sm:$0xf]
      %v697 = vld [vmem:[%s666 + $0x78] sm:$0xf]
      %v698 = vld [vmem:[%s666 + $0x7c] sm:$0xf]
      %v699 = vld [vmem:[#allocation2] sm:$0xf]
      %v700 = vld [vmem:[#allocation2 + $0x4] sm:$0xf]
      %v701 = vld [vmem:[#allocation2 + $0x8] sm:$0xf]
      %v702 = vld [vmem:[#allocation2 + $0xc] sm:$0xf]
      %v703 = vld [vmem:[#allocation2 + $0x10] sm:$0xf]
      %v704 = vld [vmem:[#allocation2 + $0x14] sm:$0xf]
      %v705 = vld [vmem:[#allocation2 + $0x18] sm:$0xf]
      %v706 = vld [vmem:[#allocation2 + $0x1c] sm:$0xf]
      %v707 = vld [vmem:[#allocation2 + $0x20] sm:$0xf]
      %v708 = vld [vmem:[#allocation2 + $0x24] sm:$0xf]
      %v709 = vld [vmem:[#allocation2 + $0x28] sm:$0xf]
      %v710 = vld [vmem:[#allocation2 + $0x2c] sm:$0xf]
      %v711 = vld [vmem:[#allocation2 + $0x30] sm:$0xf]
      %v712 = vld [vmem:[#allocation2 + $0x34] sm:$0xf]
      %v713 = vld [vmem:[#allocation2 + $0x38] sm:$0xf]
      %v714 = vld [vmem:[#allocation2 + $0x3c] sm:$0xf]
      %v731 = vunpack.c.l.b16 %v699
      %v732 = vunpack.c.l.b16 %v700
      %v733 = vunpack.c.l.b16 %v701
      %v734 = vunpack.c.l.b16 %v702
      %v735 = vunpack.c.l.b16 %v703
      %v736 = vunpack.c.l.b16 %v704
      %v737 = vunpack.c.l.b16 %v705
      %v738 = vunpack.c.l.b16 %v706
      %v739 = vunpack.c.l.b16 %v707
      %v740 = vunpack.c.l.b16 %v708
      %v741 = vunpack.c.l.b16 %v709
      %v742 = vunpack.c.l.b16 %v710
      %v743 = vunpack.c.l.b16 %v711
      %v744 = vunpack.c.l.b16 %v712
      %v745 = vunpack.c.l.b16 %v713
      %v746 = vunpack.c.l.b16 %v714
      %v747 = vpack.c.b16 %v732, %v731
      %v748 = vpack.c.b16 %v734, %v733
      %v749 = vpack.c.b16 %v736, %v735
      %v750 = vpack.c.b16 %v738, %v737
      %v751 = vpack.c.b16 %v740, %v739
      %v752 = vpack.c.b16 %v742, %v741
      %v753 = vpack.c.b16 %v744, %v743
      %v754 = vpack.c.b16 %v746, %v745
      %v787 = vunpack.c.l.b16 %v633
      %v788 = vunpack.c.l.b16 %v634
      %v789 = vunpack.c.l.b16 %v635
      %v790 = vunpack.c.l.b16 %v636
      %v791 = vunpack.c.l.b16 %v637
      %v792 = vunpack.c.l.b16 %v638
      %v793 = vunpack.c.l.b16 %v639
      %v794 = vunpack.c.l.b16 %v640
      %v795 = vunpack.c.l.b16 %v641
      %v796 = vunpack.c.l.b16 %v642
      %v797 = vunpack.c.l.b16 %v643
      %v798 = vunpack.c.l.b16 %v644
      %v799 = vunpack.c.l.b16 %v645
      %v800 = vunpack.c.l.b16 %v646
      %v801 = vunpack.c.l.b16 %v647
      %v802 = vunpack.c.l.b16 %v648
      %v803 = vunpack.c.l.b16 %v649
      %v804 = vunpack.c.l.b16 %v650
      %v805 = vunpack.c.l.b16 %v651
      %v806 = vunpack.c.l.b16 %v652
      %v807 = vunpack.c.l.b16 %v653
      %v808 = vunpack.c.l.b16 %v654
      %v809 = vunpack.c.l.b16 %v655
      %v810 = vunpack.c.l.b16 %v656
      %v811 = vunpack.c.l.b16 %v657
      %v812 = vunpack.c.l.b16 %v658
      %v813 = vunpack.c.l.b16 %v659
      %v814 = vunpack.c.l.b16 %v660
      %v815 = vunpack.c.l.b16 %v661
      %v816 = vunpack.c.l.b16 %v662
      %v817 = vunpack.c.l.b16 %v663
      %v818 = vunpack.c.l.b16 %v664
      %v819 = vpack.c.b16 %v788, %v787
      %v820 = vpack.c.b16 %v790, %v789
      %v821 = vpack.c.b16 %v792, %v791
      %v822 = vpack.c.b16 %v794, %v793
      %v823 = vpack.c.b16 %v796, %v795
      %v824 = vpack.c.b16 %v798, %v797
      %v825 = vpack.c.b16 %v800, %v799
      %v826 = vpack.c.b16 %v802, %v801
      %v827 = vpack.c.b16 %v804, %v803
      %v828 = vpack.c.b16 %v806, %v805
      %v829 = vpack.c.b16 %v808, %v807
      %v830 = vpack.c.b16 %v810, %v809
      %v831 = vpack.c.b16 %v812, %v811
      %v832 = vpack.c.b16 %v814, %v813
      %v833 = vpack.c.b16 %v816, %v815
      %v834 = vpack.c.b16 %v818, %v817
      %vm835 = vcmask 31744
      %v837 = vsel %vm835, %v747, 0
      %v840 = vsel %vm835, %v748, 0
      %v843 = vsel %vm835, %v749, 0
      %v846 = vsel %vm835, %v750, 0
      %v849 = vsel %vm835, %v751, 0
      %v852 = vsel %vm835, %v752, 0
      %v855 = vsel %vm835, %v753, 0
      %v858 = vsel %vm835, %v754, 0
      %v861 = vsel %vm835, %v819, 0
      %v864 = vsel %vm835, %v820, 0
      %v867 = vsel %vm835, %v821, 0
      %v870 = vsel %vm835, %v822, 0
      %v873 = vsel %vm835, %v823, 0
      %v876 = vsel %vm835, %v824, 0
      %v879 = vsel %vm835, %v825, 0
      %v882 = vsel %vm835, %v826, 0
      %v885 = vsel %vm835, %v827, 0
      %v888 = vsel %vm835, %v828, 0
      %v891 = vsel %vm835, %v829, 0
      %v894 = vsel %vm835, %v830, 0
      %v897 = vsel %vm835, %v831, 0
      %v900 = vsel %vm835, %v832, 0
      %v903 = vsel %vm835, %v833, 0
      %v906 = vsel %vm835, %v834, 0
      %908 = vmatprep.subr.bf16.mxu0 0
      %909 = vmatpush1.bf16.xpose.msra.mxu0 %v882
      %910 = vmatprep.subr.bf16.mxu0 0
      %911 = vmatpush1.bf16.xpose.msra.mxu0 %v879
      %912 = vmatprep.subr.bf16.mxu0 0
      %913 = vmatpush1.bf16.xpose.msra.mxu0 %v876
      %914 = vmatprep.subr.bf16.mxu0 0
      %915 = vmatpush1.bf16.xpose.msra.mxu0 %v873
      %916 = vmatprep.subr.bf16.mxu0 0
      %917 = vmatpush1.bf16.xpose.msra.mxu0 %v870
      %918 = vmatprep.subr.bf16.mxu0 0
      %919 = vmatpush1.bf16.xpose.msra.mxu0 %v867
      %920 = vmatprep.subr.bf16.mxu0 0
      %921 = vmatpush1.bf16.xpose.msra.mxu0 %v864
      %922 = vmatprep.subr.bf16.mxu0 0
      %923 = vmatpush1.bf16.xpose.msra.mxu0 %v861
      %924 = vmatprep.subr.bf16.mxu0 0
      %925 = vmatpush2.bf16.xpose.msra.mxu0 %v906
      %926 = vmatprep.subr.bf16.mxu0 0
      %927 = vmatpush2.bf16.xpose.msra.mxu0 %v903
      %928 = vmatprep.subr.bf16.mxu0 0
      %929 = vmatpush2.bf16.xpose.msra.mxu0 %v900
      %930 = vmatprep.subr.bf16.mxu0 0
      %931 = vmatpush2.bf16.xpose.msra.mxu0 %v897
      %932 = vmatprep.subr.bf16.mxu0 0
      %933 = vmatpush2.bf16.xpose.msra.mxu0 %v894
      %934 = vmatprep.subr.bf16.mxu0 0
      %935 = vmatpush2.bf16.xpose.msra.mxu0 %v891
      %936 = vmatprep.subr.bf16.mxu0 0
      %937 = vmatpush2.bf16.xpose.msra.mxu0 %v888
      %938 = vmatprep.subr.bf16.mxu0 0
      %939 = vmatpush2.bf16.xpose.msra.mxu0 %v885
      %940 = vmatprep.mubr.bf16.mxu0 0
      %941 = vmatmul.mubr.bf16.gmra.mxu0 %v837
      %v942 = vpop.f32.mrf.mxu0
      %v943 = vadd.f32 0.0, %v942
      %v944 = vpop.f32.mrf.mxu0
      %v945 = vadd.f32 0.0, %v944
      %v946 = vpop.f32.mrf.mxu0
      %v947 = vadd.f32 0.0, %v946
      %v948 = vpop.f32.mrf.mxu0
      %v949 = vadd.f32 0.0, %v948
      %950 = vmatprep.mubr.bf16.mxu0 0
      %951 = vmatmul.mubr.bf16.gmra.mxu0 %v840
      %v952 = vpop.f32.mrf.mxu0
      %v953 = vadd.f32 0.0, %v952
      %v954 = vpop.f32.mrf.mxu0
      %v955 = vadd.f32 0.0, %v954
      %v956 = vpop.f32.mrf.mxu0
      %v957 = vadd.f32 0.0, %v956
      %v958 = vpop.f32.mrf.mxu0
      %v959 = vadd.f32 0.0, %v958
      %960 = vmatprep.mubr.bf16.mxu0 0
      %961 = vmatmul.mubr.bf16.gmra.mxu0 %v843
      %v962 = vpop.f32.mrf.mxu0
      %v963 = vadd.f32 0.0, %v962
      %v964 = vpop.f32.mrf.mxu0
      %v965 = vadd.f32 0.0, %v964
      %v966 = vpop.f32.mrf.mxu0
      %v967 = vadd.f32 0.0, %v966
      %v968 = vpop.f32.mrf.mxu0
      %v969 = vadd.f32 0.0, %v968
      %970 = vmatprep.mubr.bf16.mxu0 0
      %971 = vmatmul.mubr.bf16.gmra.mxu0 %v846
      %v972 = vpop.f32.mrf.mxu0
      %v973 = vadd.f32 0.0, %v972
      %v974 = vpop.f32.mrf.mxu0
      %v975 = vadd.f32 0.0, %v974
      %v976 = vpop.f32.mrf.mxu0
      %v977 = vadd.f32 0.0, %v976
      %v978 = vpop.f32.mrf.mxu0
      %v979 = vadd.f32 0.0, %v978
      %980 = vmatprep.mubr.bf16.mxu0 0
      %981 = vmatmul.mubr.bf16.gmra.mxu0 %v849
      %v982 = vpop.f32.mrf.mxu0
      %v983 = vadd.f32 0.0, %v982
      %v984 = vpop.f32.mrf.mxu0
      %v985 = vadd.f32 0.0, %v984
      %v986 = vpop.f32.mrf.mxu0
      %v987 = vadd.f32 0.0, %v986
      %v988 = vpop.f32.mrf.mxu0
      %v989 = vadd.f32 0.0, %v988
      %990 = vmatprep.mubr.bf16.mxu0 0
      %991 = vmatmul.mubr.bf16.gmra.mxu0 %v852
      %v992 = vpop.f32.mrf.mxu0
      %v993 = vadd.f32 0.0, %v992
      %v994 = vpop.f32.mrf.mxu0
      %v995 = vadd.f32 0.0, %v994
      %v996 = vpop.f32.mrf.mxu0
      %v997 = vadd.f32 0.0, %v996
      %v998 = vpop.f32.mrf.mxu0
      %v999 = vadd.f32 0.0, %v998
      %1000 = vmatprep.mubr.bf16.mxu0 0
      %1001 = vmatmul.mubr.bf16.gmra.mxu0 %v855
      %v1002 = vpop.f32.mrf.mxu0
      %v1003 = vadd.f32 0.0, %v1002
      %v1004 = vpop.f32.mrf.mxu0
      %v1005 = vadd.f32 0.0, %v1004
      %v1006 = vpop.f32.mrf.mxu0
      %v1007 = vadd.f32 0.0, %v1006
      %v1008 = vpop.f32.mrf.mxu0
      %v1009 = vadd.f32 0.0, %v1008
      %1010 = vmatprep.mubr.bf16.mxu0 0
      %1011 = vmatmul.mubr.bf16.gmra.mxu0 %v858
      %v1012 = vpop.f32.mrf.mxu0
      %v1013 = vadd.f32 0.0, %v1012
      %v1014 = vpop.f32.mrf.mxu0
      %v1015 = vadd.f32 0.0, %v1014
      %v1016 = vpop.f32.mrf.mxu0
      %v1017 = vadd.f32 0.0, %v1016
      %v1018 = vpop.f32.mrf.mxu0
      %v1019 = vadd.f32 0.0, %v1018
      %1020 = vdwg.mxu0
      %v1021 = vlaneseq
      %v1022 = vand.u32 %v1021, 127
      %v1023 = vadd.s32 %v1022, 128
      %v1024 = vstv %s628
      %v1025 = vadd.s32 %v1024, %v1022
      %v1026 = vadd.s32 %v1024, %v1023
      %vm1027 = vcmp.lt.s32.totalorder %v1025, 144
      %vm1028 = vcmp.lt.s32.totalorder %v1026, 144
      %v1029 = vsel %vm1027, %v943, -1e+30
      %v1030 = vsel %vm1028, %v945, -1e+30
      %v1031 = vsel %vm1027, %v947, -1e+30
      %v1032 = vsel %vm1028, %v949, -1e+30
      %v1033 = vsel %vm1027, %v953, -1e+30
      %v1034 = vsel %vm1028, %v955, -1e+30
      %v1035 = vsel %vm1027, %v957, -1e+30
      %v1036 = vsel %vm1028, %v959, -1e+30
      %v1037 = vsel %vm1027, %v963, -1e+30
      %v1038 = vsel %vm1028, %v965, -1e+30
      %v1039 = vsel %vm1027, %v967, -1e+30
      %v1040 = vsel %vm1028, %v969, -1e+30
      %v1041 = vsel %vm1027, %v973, -1e+30
      %v1042 = vsel %vm1028, %v975, -1e+30
      %v1043 = vsel %vm1027, %v977, -1e+30
      %v1044 = vsel %vm1028, %v979, -1e+30
      %v1045 = vsel %vm1027, %v983, -1e+30
      %v1046 = vsel %vm1028, %v985, -1e+30
      %v1047 = vsel %vm1027, %v987, -1e+30
      %v1048 = vsel %vm1028, %v989, -1e+30
      %v1049 = vsel %vm1027, %v993, -1e+30
      %v1050 = vsel %vm1028, %v995, -1e+30
      %v1051 = vsel %vm1027, %v997, -1e+30
      %v1052 = vsel %vm1028, %v999, -1e+30
      %v1053 = vsel %vm1027, %v1003, -1e+30
      %v1054 = vsel %vm1028, %v1005, -1e+30
      %v1055 = vsel %vm1027, %v1007, -1e+30
      %v1056 = vsel %vm1028, %v1009, -1e+30
      %v1057 = vsel %vm1027, %v1013, -1e+30
      %v1058 = vsel %vm1028, %v1015, -1e+30
      %v1059 = vsel %vm1027, %v1017, -1e+30
      %v1060 = vsel %vm1028, %v1019, -1e+30
      %v1061 = vld [vmem:[#allocation3] sm:$0xff]
      %v1062 = vld [vmem:[#allocation3 + $0x8] sm:$0xff]
      %v1063 = vld [vmem:[#allocation3 + $0x10] sm:$0xff]
      %v1064 = vld [vmem:[#allocation3 + $0x18] sm:$0xff]
      %v1065 = vld [vmem:[#allocation3 + $0x20] sm:$0xff]
      %v1066 = vld [vmem:[#allocation3 + $0x28] sm:$0xff]
      %v1067 = vld [vmem:[#allocation3 + $0x30] sm:$0xff]
      %v1068 = vld [vmem:[#allocation3 + $0x38] sm:$0xff]
      %v1069 = vld [vmem:[#allocation3 + $0x40] sm:$0xff]
      %v1070 = vld [vmem:[#allocation3 + $0x48] sm:$0xff]
      %v1071 = vld [vmem:[#allocation3 + $0x50] sm:$0xff]
      %v1072 = vld [vmem:[#allocation3 + $0x58] sm:$0xff]
      %v1073 = vld [vmem:[#allocation3 + $0x60] sm:$0xff]
      %v1074 = vld [vmem:[#allocation3 + $0x68] sm:$0xff]
      %v1075 = vld [vmem:[#allocation3 + $0x70] sm:$0xff]
      %v1076 = vld [vmem:[#allocation3 + $0x78] sm:$0xff]
      %v1077 = vmax.f32 %v1029, %v1030
      %1078 = vmax.xlane.f32.xlu0 %v1077
      %v1079 = vpop.xlane.xlu0 %1078
      %v1080 = vmax.f32 %v1031, %v1032
      %1081 = vmax.xlane.f32.xlu0 %v1080
      %v1082 = vpop.xlane.xlu0 %1081
      %v1083 = vmax.f32 %v1033, %v1034
      %1084 = vmax.xlane.f32.xlu0 %v1083
      %v1085 = vpop.xlane.xlu0 %1084
      %v1086 = vmax.f32 %v1035, %v1036
      %1087 = vmax.xlane.f32.xlu0 %v1086
      %v1088 = vpop.xlane.xlu0 %1087
      %v1089 = vmax.f32 %v1037, %v1038
      %1090 = vmax.xlane.f32.xlu0 %v1089
      %v1091 = vpop.xlane.xlu0 %1090
      %v1092 = vmax.f32 %v1039, %v1040
      %1093 = vmax.xlane.f32.xlu0 %v1092
      %v1094 = vpop.xlane.xlu0 %1093
      %v1095 = vmax.f32 %v1041, %v1042
      %1096 = vmax.xlane.f32.xlu0 %v1095
      %v1097 = vpop.xlane.xlu0 %1096
      %v1098 = vmax.f32 %v1043, %v1044
      %1099 = vmax.xlane.f32.xlu0 %v1098
      %v1100 = vpop.xlane.xlu0 %1099
      %v1101 = vmax.f32 %v1045, %v1046
      %1102 = vmax.xlane.f32.xlu0 %v1101
      %v1103 = vpop.xlane.xlu0 %1102
      %v1104 = vmax.f32 %v1047, %v1048
      %1105 = vmax.xlane.f32.xlu0 %v1104
      %v1106 = vpop.xlane.xlu0 %1105
      %v1107 = vmax.f32 %v1049, %v1050
      %1108 = vmax.xlane.f32.xlu0 %v1107
      %v1109 = vpop.xlane.xlu0 %1108
      %v1110 = vmax.f32 %v1051, %v1052
      %1111 = vmax.xlane.f32.xlu0 %v1110
      %v1112 = vpop.xlane.xlu0 %1111
      %v1113 = vmax.f32 %v1053, %v1054
      %1114 = vmax.xlane.f32.xlu0 %v1113
      %v1115 = vpop.xlane.xlu0 %1114
      %v1116 = vmax.f32 %v1055, %v1056
      %1117 = vmax.xlane.f32.xlu0 %v1116
      %v1118 = vpop.xlane.xlu0 %1117
      %v1119 = vmax.f32 %v1057, %v1058
      %1120 = vmax.xlane.f32.xlu0 %v1119
      %v1121 = vpop.xlane.xlu0 %1120
      %v1122 = vmax.f32 %v1059, %v1060
      %1123 = vmax.xlane.f32.xlu0 %v1122
      %v1124 = vpop.xlane.xlu0 %1123
      %v1125 = vmax.f32 %v1061, %v1079
      %v1126 = vmax.f32 %v1062, %v1082
      %v1127 = vmax.f32 %v1063, %v1085
      %v1128 = vmax.f32 %v1064, %v1088
      %v1129 = vmax.f32 %v1065, %v1091
      %v1130 = vmax.f32 %v1066, %v1094
      %v1131 = vmax.f32 %v1067, %v1097
      %v1132 = vmax.f32 %v1068, %v1100
      %v1133 = vmax.f32 %v1069, %v1103
      %v1134 = vmax.f32 %v1070, %v1106
      %v1135 = vmax.f32 %v1071, %v1109
      %v1136 = vmax.f32 %v1072, %v1112
      %v1137 = vmax.f32 %v1073, %v1115
      %v1138 = vmax.f32 %v1074, %v1118
      %v1139 = vmax.f32 %v1075, %v1121
      %v1140 = vmax.f32 %v1076, %v1124
      %v1141 = vsub.f32 %v1061, %v1125
      %v1142 = vsub.f32 %v1062, %v1126
      %v1143 = vsub.f32 %v1063, %v1127
      %v1144 = vsub.f32 %v1064, %v1128
      %v1145 = vsub.f32 %v1065, %v1129
      %v1146 = vsub.f32 %v1066, %v1130
      %v1147 = vsub.f32 %v1067, %v1131
      %v1148 = vsub.f32 %v1068, %v1132
      %v1149 = vsub.f32 %v1069, %v1133
      %v1150 = vsub.f32 %v1070, %v1134
      %v1151 = vsub.f32 %v1071, %v1135
      %v1152 = vsub.f32 %v1072, %v1136
      %v1153 = vsub.f32 %v1073, %v1137
      %v1154 = vsub.f32 %v1074, %v1138
      %v1155 = vsub.f32 %v1075, %v1139
      %v1156 = vsub.f32 %v1076, %v1140
      %v1157 = vmul.f32 %v1141, 1.442695
      %v1158 = vpow.pop %v1157
      %v1159 = vmul.f32 %v1142, 1.442695
      %v1160 = vpow.pop %v1159
      %v1161 = vmul.f32 %v1143, 1.442695
      %v1162 = vpow.pop %v1161
      %v1163 = vmul.f32 %v1144, 1.442695
      %v1164 = vpow.pop %v1163
      %v1165 = vmul.f32 %v1145, 1.442695
      %v1166 = vpow.pop %v1165
      %v1167 = vmul.f32 %v1146, 1.442695
      %v1168 = vpow.pop %v1167
      %v1169 = vmul.f32 %v1147, 1.442695
      %v1170 = vpow.pop %v1169
      %v1171 = vmul.f32 %v1148, 1.442695
      %v1172 = vpow.pop %v1171
      %v1173 = vmul.f32 %v1149, 1.442695
      %v1174 = vpow.pop %v1173
      %v1175 = vmul.f32 %v1150, 1.442695
      %v1176 = vpow.pop %v1175
      %v1177 = vmul.f32 %v1151, 1.442695
      %v1178 = vpow.pop %v1177
      %v1179 = vmul.f32 %v1152, 1.442695
      %v1180 = vpow.pop %v1179
      %v1181 = vmul.f32 %v1153, 1.442695
      %v1182 = vpow.pop %v1181
      %v1183 = vmul.f32 %v1154, 1.442695
      %v1184 = vpow.pop %v1183
      %v1185 = vmul.f32 %v1155, 1.442695
      %v1186 = vpow.pop %v1185
      %v1187 = vmul.f32 %v1156, 1.442695
      %v1188 = vpow.pop %v1187
      %1190 = vset.pattern.permute.xlu0 0
      %1191 = vperm.xlu0 %1190, %v1125
      %v1192 = vpop.permute.xlu0 %1191
      %1195 = vset.pattern.permute.xlu0 0
      %1196 = vperm.xlu0 %1195, %v1126
      %v1197 = vpop.permute.xlu0 %1196
      %1200 = vset.pattern.permute.xlu0 0
      %1201 = vperm.xlu0 %1200, %v1127
      %v1202 = vpop.permute.xlu0 %1201
      %1205 = vset.pattern.permute.xlu0 0
      %1206 = vperm.xlu0 %1205, %v1128
      %v1207 = vpop.permute.xlu0 %1206
      %1210 = vset.pattern.permute.xlu0 0
      %1211 = vperm.xlu0 %1210, %v1129
      %v1212 = vpop.permute.xlu0 %1211
      %1215 = vset.pattern.permute.xlu0 0
      %1216 = vperm.xlu0 %1215, %v1130
      %v1217 = vpop.permute.xlu0 %1216
      %1220 = vset.pattern.permute.xlu0 0
      %1221 = vperm.xlu0 %1220, %v1131
      %v1222 = vpop.permute.xlu0 %1221
      %1225 = vset.pattern.permute.xlu0 0
      %1226 = vperm.xlu0 %1225, %v1132
      %v1227 = vpop.permute.xlu0 %1226
      %1230 = vset.pattern.permute.xlu0 0
      %1231 = vperm.xlu0 %1230, %v1133
      %v1232 = vpop.permute.xlu0 %1231
      %1235 = vset.pattern.permute.xlu0 0
      %1236 = vperm.xlu0 %1235, %v1134
      %v1237 = vpop.permute.xlu0 %1236
      %1240 = vset.pattern.permute.xlu0 0
      %1241 = vperm.xlu0 %1240, %v1135
      %v1242 = vpop.permute.xlu0 %1241
      %1245 = vset.pattern.permute.xlu0 0
      %1246 = vperm.xlu0 %1245, %v1136
      %v1247 = vpop.permute.xlu0 %1246
      %1250 = vset.pattern.permute.xlu0 0
      %1251 = vperm.xlu0 %1250, %v1137
      %v1252 = vpop.permute.xlu0 %1251
      %1255 = vset.pattern.permute.xlu0 0
      %1256 = vperm.xlu0 %1255, %v1138
      %v1257 = vpop.permute.xlu0 %1256
      %1260 = vset.pattern.permute.xlu0 0
      %1261 = vperm.xlu0 %1260, %v1139
      %v1262 = vpop.permute.xlu0 %1261
      %1265 = vset.pattern.permute.xlu0 0
      %1266 = vperm.xlu0 %1265, %v1140
      %v1267 = vpop.permute.xlu0 %1266
      %v1269 = vsub.f32 %v1029, %v1192
      %v1270 = vsub.f32 %v1030, %v1192
      %v1271 = vsub.f32 %v1031, %v1197
      %v1272 = vsub.f32 %v1032, %v1197
      %v1273 = vsub.f32 %v1033, %v1202
      %v1274 = vsub.f32 %v1034, %v1202
      %v1275 = vsub.f32 %v1035, %v1207
      %v1276 = vsub.f32 %v1036, %v1207
      %v1277 = vsub.f32 %v1037, %v1212
      %v1278 = vsub.f32 %v1038, %v1212
      %v1279 = vsub.f32 %v1039, %v1217
      %v1280 = vsub.f32 %v1040, %v1217
      %v1281 = vsub.f32 %v1041, %v1222
      %v1282 = vsub.f32 %v1042, %v1222
      %v1283 = vsub.f32 %v1043, %v1227
      %v1284 = vsub.f32 %v1044, %v1227
      %v1285 = vsub.f32 %v1045, %v1232
      %v1286 = vsub.f32 %v1046, %v1232
      %v1287 = vsub.f32 %v1047, %v1237
      %v1288 = vsub.f32 %v1048, %v1237
      %v1289 = vsub.f32 %v1049, %v1242
      %v1290 = vsub.f32 %v1050, %v1242
      %v1291 = vsub.f32 %v1051, %v1247
      %v1292 = vsub.f32 %v1052, %v1247
      %v1293 = vsub.f32 %v1053, %v1252
      %v1294 = vsub.f32 %v1054, %v1252
      %v1295 = vsub.f32 %v1055, %v1257
      %v1296 = vsub.f32 %v1056, %v1257
      %v1297 = vsub.f32 %v1057, %v1262
      %v1298 = vsub.f32 %v1058, %v1262
      %v1299 = vsub.f32 %v1059, %v1267
      %v1300 = vsub.f32 %v1060, %v1267
      %v1301 = vpack.c.bf16 %v1271, %v1269
      %v1302 = vpack.c.bf16 %v1272, %v1270
      %v1303 = vpack.c.bf16 %v1275, %v1273
      %v1304 = vpack.c.bf16 %v1276, %v1274
      %v1305 = vpack.c.bf16 %v1279, %v1277
      %v1306 = vpack.c.bf16 %v1280, %v1278
      %v1307 = vpack.c.bf16 %v1283, %v1281
      %v1308 = vpack.c.bf16 %v1284, %v1282
      %v1309 = vpack.c.bf16 %v1287, %v1285
      %v1310 = vpack.c.bf16 %v1288, %v1286
      %v1311 = vpack.c.bf16 %v1291, %v1289
      %v1312 = vpack.c.bf16 %v1292, %v1290
      %v1313 = vpack.c.bf16 %v1295, %v1293
      %v1314 = vpack.c.bf16 %v1296, %v1294
      %v1315 = vpack.c.bf16 %v1299, %v1297
      %v1316 = vpack.c.bf16 %v1300, %v1298
      %v1318 = vmul.bf16 %v1301, 1069105081
      %v1319 = vpow.bf16.pop %v1318
      %v1321 = vmul.bf16 %v1302, 1069105081
      %v1322 = vpow.bf16.pop %v1321
      %v1324 = vmul.bf16 %v1303, 1069105081
      %v1325 = vpow.bf16.pop %v1324
      %v1327 = vmul.bf16 %v1304, 1069105081
      %v1328 = vpow.bf16.pop %v1327
      %v1330 = vmul.bf16 %v1305, 1069105081
      %v1331 = vpow.bf16.pop %v1330
      %v1333 = vmul.bf16 %v1306, 1069105081
      %v1334 = vpow.bf16.pop %v1333
      %v1336 = vmul.bf16 %v1307, 1069105081
      %v1337 = vpow.bf16.pop %v1336
      %v1339 = vmul.bf16 %v1308, 1069105081
      %v1340 = vpow.bf16.pop %v1339
      %v1342 = vmul.bf16 %v1309, 1069105081
      %v1343 = vpow.bf16.pop %v1342
      %v1345 = vmul.bf16 %v1310, 1069105081
      %v1346 = vpow.bf16.pop %v1345
      %v1348 = vmul.bf16 %v1311, 1069105081
      %v1349 = vpow.bf16.pop %v1348
      %v1351 = vmul.bf16 %v1312, 1069105081
      %v1352 = vpow.bf16.pop %v1351
      %v1354 = vmul.bf16 %v1313, 1069105081
      %v1355 = vpow.bf16.pop %v1354
      %v1357 = vmul.bf16 %v1314, 1069105081
      %v1358 = vpow.bf16.pop %v1357
      %v1360 = vmul.bf16 %v1315, 1069105081
      %v1361 = vpow.bf16.pop %v1360
      %v1363 = vmul.bf16 %v1316, 1069105081
      %v1364 = vpow.bf16.pop %v1363
      %v1365 = vld [vmem:[#allocation4] sm:$0xff]
      %v1366 = vld [vmem:[#allocation4 + $0x8] sm:$0xff]
      %v1367 = vld [vmem:[#allocation4 + $0x10] sm:$0xff]
      %v1368 = vld [vmem:[#allocation4 + $0x18] sm:$0xff]
      %v1369 = vld [vmem:[#allocation4 + $0x20] sm:$0xff]
      %v1370 = vld [vmem:[#allocation4 + $0x28] sm:$0xff]
      %v1371 = vld [vmem:[#allocation4 + $0x30] sm:$0xff]
      %v1372 = vld [vmem:[#allocation4 + $0x38] sm:$0xff]
      %v1373 = vld [vmem:[#allocation4 + $0x40] sm:$0xff]
      %v1374 = vld [vmem:[#allocation4 + $0x48] sm:$0xff]
      %v1375 = vld [vmem:[#allocation4 + $0x50] sm:$0xff]
      %v1376 = vld [vmem:[#allocation4 + $0x58] sm:$0xff]
      %v1377 = vld [vmem:[#allocation4 + $0x60] sm:$0xff]
      %v1378 = vld [vmem:[#allocation4 + $0x68] sm:$0xff]
      %v1379 = vld [vmem:[#allocation4 + $0x70] sm:$0xff]
      %v1380 = vld [vmem:[#allocation4 + $0x78] sm:$0xff]
      %1382 = vset.pattern.permute.xlu0 0
      %1383 = vperm.xlu0 %1382, %v1158
      %v1384 = vpop.permute.xlu0 %1383
      %1387 = vset.pattern.permute.xlu0 0
      %1388 = vperm.xlu0 %1387, %v1160
      %v1389 = vpop.permute.xlu0 %1388
      %1392 = vset.pattern.permute.xlu0 0
      %1393 = vperm.xlu0 %1392, %v1162
      %v1394 = vpop.permute.xlu0 %1393
      %1397 = vset.pattern.permute.xlu0 0
      %1398 = vperm.xlu0 %1397, %v1164
      %v1399 = vpop.permute.xlu0 %1398
      %1402 = vset.pattern.permute.xlu0 0
      %1403 = vperm.xlu0 %1402, %v1166
      %v1404 = vpop.permute.xlu0 %1403
      %1407 = vset.pattern.permute.xlu0 0
      %1408 = vperm.xlu0 %1407, %v1168
      %v1409 = vpop.permute.xlu0 %1408
      %1412 = vset.pattern.permute.xlu0 0
      %1413 = vperm.xlu0 %1412, %v1170
      %v1414 = vpop.permute.xlu0 %1413
      %1417 = vset.pattern.permute.xlu0 0
      %1418 = vperm.xlu0 %1417, %v1172
      %v1419 = vpop.permute.xlu0 %1418
      %1422 = vset.pattern.permute.xlu0 0
      %1423 = vperm.xlu0 %1422, %v1174
      %v1424 = vpop.permute.xlu0 %1423
      %1427 = vset.pattern.permute.xlu0 0
      %1428 = vperm.xlu0 %1427, %v1176
      %v1429 = vpop.permute.xlu0 %1428
      %1432 = vset.pattern.permute.xlu0 0
      %1433 = vperm.xlu0 %1432, %v1178
      %v1434 = vpop.permute.xlu0 %1433
      %1437 = vset.pattern.permute.xlu0 0
      %1438 = vperm.xlu0 %1437, %v1180
      %v1439 = vpop.permute.xlu0 %1438
      %1442 = vset.pattern.permute.xlu0 0
      %1443 = vperm.xlu0 %1442, %v1182
      %v1444 = vpop.permute.xlu0 %1443
      %1447 = vset.pattern.permute.xlu0 0
      %1448 = vperm.xlu0 %1447, %v1184
      %v1449 = vpop.permute.xlu0 %1448
      %1452 = vset.pattern.permute.xlu0 0
      %1453 = vperm.xlu0 %1452, %v1186
      %v1454 = vpop.permute.xlu0 %1453
      %1457 = vset.pattern.permute.xlu0 0
      %1458 = vperm.xlu0 %1457, %v1188
      %v1459 = vpop.permute.xlu0 %1458
      %v1461 = vmul.f32 %v1384, %v1365
      %v1462 = vmul.f32 %v1389, %v1366
      %v1463 = vmul.f32 %v1394, %v1367
      %v1464 = vmul.f32 %v1399, %v1368
      %v1465 = vmul.f32 %v1404, %v1369
      %v1466 = vmul.f32 %v1409, %v1370
      %v1467 = vmul.f32 %v1414, %v1371
      %v1468 = vmul.f32 %v1419, %v1372
      %v1469 = vmul.f32 %v1424, %v1373
      %v1470 = vmul.f32 %v1429, %v1374
      %v1471 = vmul.f32 %v1434, %v1375
      %v1472 = vmul.f32 %v1439, %v1376
      %v1473 = vmul.f32 %v1444, %v1377
      %v1474 = vmul.f32 %v1449, %v1378
      %v1475 = vmul.f32 %v1454, %v1379
      %v1476 = vmul.f32 %v1459, %v1380
      %v1509 = vunpack.c.l.b16 %v667
      %v1510 = vunpack.c.l.b16 %v668
      %v1511 = vunpack.c.l.b16 %v669
      %v1512 = vunpack.c.l.b16 %v670
      %v1513 = vunpack.c.l.b16 %v671
      %v1514 = vunpack.c.l.b16 %v672
      %v1515 = vunpack.c.l.b16 %v673
      %v1516 = vunpack.c.l.b16 %v674
      %v1517 = vunpack.c.l.b16 %v675
      %v1518 = vunpack.c.l.b16 %v676
      %v1519 = vunpack.c.l.b16 %v677
      %v1520 = vunpack.c.l.b16 %v678
      %v1521 = vunpack.c.l.b16 %v679
      %v1522 = vunpack.c.l.b16 %v680
      %v1523 = vunpack.c.l.b16 %v681
      %v1524 = vunpack.c.l.b16 %v682
      %v1525 = vunpack.c.l.b16 %v683
      %v1526 = vunpack.c.l.b16 %v684
      %v1527 = vunpack.c.l.b16 %v685
      %v1528 = vunpack.c.l.b16 %v686
      %v1529 = vunpack.c.l.b16 %v687
      %v1530 = vunpack.c.l.b16 %v688
      %v1531 = vunpack.c.l.b16 %v689
      %v1532 = vunpack.c.l.b16 %v690
      %v1533 = vunpack.c.l.b16 %v691
      %v1534 = vunpack.c.l.b16 %v692
      %v1535 = vunpack.c.l.b16 %v693
      %v1536 = vunpack.c.l.b16 %v694
      %v1537 = vunpack.c.l.b16 %v695
      %v1538 = vunpack.c.l.b16 %v696
      %v1539 = vunpack.c.l.b16 %v697
      %v1540 = vunpack.c.l.b16 %v698
      %v1541 = vpack.c.b16 %v1510, %v1509
      %v1542 = vpack.c.b16 %v1512, %v1511
      %v1543 = vpack.c.b16 %v1514, %v1513
      %v1544 = vpack.c.b16 %v1516, %v1515
      %v1545 = vpack.c.b16 %v1518, %v1517
      %v1546 = vpack.c.b16 %v1520, %v1519
      %v1547 = vpack.c.b16 %v1522, %v1521
      %v1548 = vpack.c.b16 %v1524, %v1523
      %v1549 = vpack.c.b16 %v1526, %v1525
      %v1550 = vpack.c.b16 %v1528, %v1527
      %v1551 = vpack.c.b16 %v1530, %v1529
      %v1552 = vpack.c.b16 %v1532, %v1531
      %v1553 = vpack.c.b16 %v1534, %v1533
      %v1554 = vpack.c.b16 %v1536, %v1535
      %v1555 = vpack.c.b16 %v1538, %v1537
      %v1556 = vpack.c.b16 %v1540, %v1539
      %1573 = vmatprep.subr.bf16.mxu0 0
      %1574 = vmatpush1.bf16.msra.mxu0 %v1548
      %1575 = vmatprep.subr.bf16.mxu0 0
      %1576 = vmatpush1.bf16.msra.mxu0 %v1547
      %1577 = vmatprep.subr.bf16.mxu0 0
      %1578 = vmatpush1.bf16.msra.mxu0 %v1546
      %1579 = vmatprep.subr.bf16.mxu0 0
      %1580 = vmatpush1.bf16.msra.mxu0 %v1545
      %1581 = vmatprep.subr.bf16.mxu0 0
      %1582 = vmatpush1.bf16.msra.mxu0 %v1544
      %1583 = vmatprep.subr.bf16.mxu0 0
      %1584 = vmatpush1.bf16.msra.mxu0 %v1543
      %1585 = vmatprep.subr.bf16.mxu0 0
      %1586 = vmatpush1.bf16.msra.mxu0 %v1542
      %1587 = vmatprep.subr.bf16.mxu0 0
      %1588 = vmatpush1.bf16.msra.mxu0 %v1541
      %1589 = vmatprep.subr.bf16.mxu0 0
      %1590 = vmatpush2.bf16.msra.mxu0 %v1556
      %1591 = vmatprep.subr.bf16.mxu0 0
      %1592 = vmatpush2.bf16.msra.mxu0 %v1555
      %1593 = vmatprep.subr.bf16.mxu0 0
      %1594 = vmatpush2.bf16.msra.mxu0 %v1554
      %1595 = vmatprep.subr.bf16.mxu0 0
      %1596 = vmatpush2.bf16.msra.mxu0 %v1553
      %1597 = vmatprep.subr.bf16.mxu0 0
      %1598 = vmatpush2.bf16.msra.mxu0 %v1552
      %1599 = vmatprep.subr.bf16.mxu0 0
      %1600 = vmatpush2.bf16.msra.mxu0 %v1551
      %1601 = vmatprep.subr.bf16.mxu0 0
      %1602 = vmatpush2.bf16.msra.mxu0 %v1550
      %1603 = vmatprep.subr.bf16.mxu0 0
      %1604 = vmatpush2.bf16.msra.mxu0 %v1549
      %1605 = vmatprep.mubr.bf16.mxu0 %v1322
      %1606 = vmatmul.mubr.bf16.gmra.mxu0 %v1319
      %v1607 = vpop.f32.mrf.mxu0
      %v1608 = vadd.f32 0.0, %v1607
      %v1609 = vpop.f32.mrf.mxu0
      %v1610 = vpop.f32.mrf.mxu0
      %v1611 = vadd.f32 0.0, %v1610
      %v1612 = vpop.f32.mrf.mxu0
      %1613 = vmatprep.mubr.bf16.mxu0 %v1328
      %1614 = vmatmul.mubr.bf16.gmra.mxu0 %v1325
      %v1615 = vpop.f32.mrf.mxu0
      %v1616 = vadd.f32 0.0, %v1615
      %v1617 = vpop.f32.mrf.mxu0
      %v1618 = vpop.f32.mrf.mxu0
      %v1619 = vadd.f32 0.0, %v1618
      %v1620 = vpop.f32.mrf.mxu0
      %1621 = vmatprep.mubr.bf16.mxu0 %v1334
      %1622 = vmatmul.mubr.bf16.gmra.mxu0 %v1331
      %v1623 = vpop.f32.mrf.mxu0
      %v1624 = vadd.f32 0.0, %v1623
      %v1625 = vpop.f32.mrf.mxu0
      %v1626 = vpop.f32.mrf.mxu0
      %v1627 = vadd.f32 0.0, %v1626
      %v1628 = vpop.f32.mrf.mxu0
      %1629 = vmatprep.mubr.bf16.mxu0 %v1340
      %1630 = vmatmul.mubr.bf16.gmra.mxu0 %v1337
      %v1631 = vpop.f32.mrf.mxu0
      %v1632 = vadd.f32 0.0, %v1631
      %v1633 = vpop.f32.mrf.mxu0
      %v1634 = vpop.f32.mrf.mxu0
      %v1635 = vadd.f32 0.0, %v1634
      %v1636 = vpop.f32.mrf.mxu0
      %1637 = vmatprep.mubr.bf16.mxu0 %v1346
      %1638 = vmatmul.mubr.bf16.gmra.mxu0 %v1343
      %v1639 = vpop.f32.mrf.mxu0
      %v1640 = vadd.f32 0.0, %v1639
      %v1641 = vpop.f32.mrf.mxu0
      %v1642 = vpop.f32.mrf.mxu0
      %v1643 = vadd.f32 0.0, %v1642
      %v1644 = vpop.f32.mrf.mxu0
      %1645 = vmatprep.mubr.bf16.mxu0 %v1352
      %1646 = vmatmul.mubr.bf16.gmra.mxu0 %v1349
      %v1647 = vpop.f32.mrf.mxu0
      %v1648 = vadd.f32 0.0, %v1647
      %v1649 = vpop.f32.mrf.mxu0
      %v1650 = vpop.f32.mrf.mxu0
      %v1651 = vadd.f32 0.0, %v1650
      %v1652 = vpop.f32.mrf.mxu0
      %1653 = vmatprep.mubr.bf16.mxu0 %v1358
      %1654 = vmatmul.mubr.bf16.gmra.mxu0 %v1355
      %v1655 = vpop.f32.mrf.mxu0
      %v1656 = vadd.f32 0.0, %v1655
      %v1657 = vpop.f32.mrf.mxu0
      %v1658 = vpop.f32.mrf.mxu0
      %v1659 = vadd.f32 0.0, %v1658
      %v1660 = vpop.f32.mrf.mxu0
      %1661 = vmatprep.mubr.bf16.mxu0 %v1364
      %1662 = vmatmul.mubr.bf16.gmra.mxu0 %v1361
      %v1663 = vpop.f32.mrf.mxu0
      %v1664 = vadd.f32 0.0, %v1663
      %v1665 = vpop.f32.mrf.mxu0
      %v1666 = vpop.f32.mrf.mxu0
      %v1667 = vadd.f32 0.0, %v1666
      %v1668 = vpop.f32.mrf.mxu0
      %1669 = vdwg.mxu0
      %v1670 = vadd.f32 %v1461, %v1608
      %v1671 = vadd.f32 %v1462, %v1611
      %v1672 = vadd.f32 %v1463, %v1616
      %v1673 = vadd.f32 %v1464, %v1619
      %v1674 = vadd.f32 %v1465, %v1624
      %v1675 = vadd.f32 %v1466, %v1627
      %v1676 = vadd.f32 %v1467, %v1632
      %v1677 = vadd.f32 %v1468, %v1635
      %v1678 = vadd.f32 %v1469, %v1640
      %v1679 = vadd.f32 %v1470, %v1643
      %v1680 = vadd.f32 %v1471, %v1648
      %v1681 = vadd.f32 %v1472, %v1651
      %v1682 = vadd.f32 %v1473, %v1656
      %v1683 = vadd.f32 %v1474, %v1659
      %v1684 = vadd.f32 %v1475, %v1664
      %v1685 = vadd.f32 %v1476, %v1667
      %vm1686 = vcmask 269312
      %1687 = vst.msk [vmem:[#allocation4] sm:$0xff] %vm1686, %v1670
      %1688 = vst.msk [vmem:[#allocation4 + $0x8] sm:$0xff] %vm1686, %v1671
      %1689 = vst.msk [vmem:[#allocation4 + $0x10] sm:$0xff] %vm1686, %v1672
      %1690 = vst.msk [vmem:[#allocation4 + $0x18] sm:$0xff] %vm1686, %v1673
      %1691 = vst.msk [vmem:[#allocation4 + $0x20] sm:$0xff] %vm1686, %v1674
      %1692 = vst.msk [vmem:[#allocation4 + $0x28] sm:$0xff] %vm1686, %v1675
      %1693 = vst.msk [vmem:[#allocation4 + $0x30] sm:$0xff] %vm1686, %v1676
      %1694 = vst.msk [vmem:[#allocation4 + $0x38] sm:$0xff] %vm1686, %v1677
      %1695 = vst.msk [vmem:[#allocation4 + $0x40] sm:$0xff] %vm1686, %v1678
      %1696 = vst.msk [vmem:[#allocation4 + $0x48] sm:$0xff] %vm1686, %v1679
      %1697 = vst.msk [vmem:[#allocation4 + $0x50] sm:$0xff] %vm1686, %v1680
      %1698 = vst.msk [vmem:[#allocation4 + $0x58] sm:$0xff] %vm1686, %v1681
      %1699 = vst.msk [vmem:[#allocation4 + $0x60] sm:$0xff] %vm1686, %v1682
      %1700 = vst.msk [vmem:[#allocation4 + $0x68] sm:$0xff] %vm1686, %v1683
      %1701 = vst.msk [vmem:[#allocation4 + $0x70] sm:$0xff] %vm1686, %v1684
      %1702 = vst.msk [vmem:[#allocation4 + $0x78] sm:$0xff] %vm1686, %v1685
      %vm1703 = vcmask 7168
      %1704 = vst.msk [vmem:[#allocation3] sm:$0xff] %vm1703, %v1125
      %1705 = vst.msk [vmem:[#allocation3 + $0x8] sm:$0xff] %vm1703, %v1126
      %1706 = vst.msk [vmem:[#allocation3 + $0x10] sm:$0xff] %vm1703, %v1127
      %1707 = vst.msk [vmem:[#allocation3 + $0x18] sm:$0xff] %vm1703, %v1128
      %1708 = vst.msk [vmem:[#allocation3 + $0x20] sm:$0xff] %vm1703, %v1129
      %1709 = vst.msk [vmem:[#allocation3 + $0x28] sm:$0xff] %vm1703, %v1130
      %1710 = vst.msk [vmem:[#allocation3 + $0x30] sm:$0xff] %vm1703, %v1131
      %1711 = vst.msk [vmem:[#allocation3 + $0x38] sm:$0xff] %vm1703, %v1132
      %1712 = vst.msk [vmem:[#allocation3 + $0x40] sm:$0xff] %vm1703, %v1133
      %1713 = vst.msk [vmem:[#allocation3 + $0x48] sm:$0xff] %vm1703, %v1134
      %1714 = vst.msk [vmem:[#allocation3 + $0x50] sm:$0xff] %vm1703, %v1135
      %1715 = vst.msk [vmem:[#allocation3 + $0x58] sm:$0xff] %vm1703, %v1136
      %1716 = vst.msk [vmem:[#allocation3 + $0x60] sm:$0xff] %vm1703, %v1137
      %1717 = vst.msk [vmem:[#allocation3 + $0x68] sm:$0xff] %vm1703, %v1138
      %1718 = vst.msk [vmem:[#allocation3 + $0x70] sm:$0xff] %vm1703, %v1139
      %1719 = vst.msk [vmem:[#allocation3 + $0x78] sm:$0xff] %vm1703, %v1140
      // Predicated region
      $region49: #{tpu_custom_call.1} parent=43 // pred_check
        %p1720 = pneg %p340
      $region50: #{tpu_custom_call.1} parent=43 // pred_check_branch
        %1722 = sbr.rel (%p1720) target = $region52
      $region51: #{tpu_custom_call.1} parent=43 // pred_region
        %v1723 = vld [vmem:[#allocation4] sm:$0xff]
        %v1724 = vld [vmem:[#allocation4 + $0x8] sm:$0xff]
        %v1725 = vld [vmem:[#allocation4 + $0x10] sm:$0xff]
        %v1726 = vld [vmem:[#allocation4 + $0x18] sm:$0xff]
        %v1727 = vld [vmem:[#allocation4 + $0x20] sm:$0xff]
        %v1728 = vld [vmem:[#allocation4 + $0x28] sm:$0xff]
        %v1729 = vld [vmem:[#allocation4 + $0x30] sm:$0xff]
        %v1730 = vld [vmem:[#allocation4 + $0x38] sm:$0xff]
        %v1731 = vld [vmem:[#allocation4 + $0x40] sm:$0xff]
        %v1732 = vld [vmem:[#allocation4 + $0x48] sm:$0xff]
        %v1733 = vld [vmem:[#allocation4 + $0x50] sm:$0xff]
        %v1734 = vld [vmem:[#allocation4 + $0x58] sm:$0xff]
        %v1735 = vld [vmem:[#allocation4 + $0x60] sm:$0xff]
        %v1736 = vld [vmem:[#allocation4 + $0x68] sm:$0xff]
        %v1737 = vld [vmem:[#allocation4 + $0x70] sm:$0xff]
        %v1738 = vld [vmem:[#allocation4 + $0x78] sm:$0xff]
        %v1739 = vrcp.pop %v1723
        %v1740 = vrcp.pop %v1724
        %v1741 = vrcp.pop %v1725
        %v1742 = vrcp.pop %v1726
        %v1743 = vrcp.pop %v1727
        %v1744 = vrcp.pop %v1728
        %v1745 = vrcp.pop %v1729
        %v1746 = vrcp.pop %v1730
        %v1747 = vrcp.pop %v1731
        %v1748 = vrcp.pop %v1732
        %v1749 = vrcp.pop %v1733
        %v1750 = vrcp.pop %v1734
        %v1751 = vrcp.pop %v1735
        %v1752 = vrcp.pop %v1736
        %v1753 = vrcp.pop %v1737
        %v1754 = vrcp.pop %v1738
        %s1755 = sld [smem:[#allocation5]]
        %v1756 = vstv %s1755
        %v1757 = vmul.f32 %v1756, %v1739
        %v1758 = vmul.f32 %v1756, %v1740
        %v1759 = vmul.f32 %v1756, %v1741
        %v1760 = vmul.f32 %v1756, %v1742
        %v1761 = vmul.f32 %v1756, %v1743
        %v1762 = vmul.f32 %v1756, %v1744
        %v1763 = vmul.f32 %v1756, %v1745
        %v1764 = vmul.f32 %v1756, %v1746
        %v1765 = vmul.f32 %v1756, %v1747
        %v1766 = vmul.f32 %v1756, %v1748
        %v1767 = vmul.f32 %v1756, %v1749
        %v1768 = vmul.f32 %v1756, %v1750
        %v1769 = vmul.f32 %v1756, %v1751
        %v1770 = vmul.f32 %v1756, %v1752
        %v1771 = vmul.f32 %v1756, %v1753
        %v1772 = vmul.f32 %v1756, %v1754
        %1774 = vset.pattern.permute.xlu0 32
        %1775 = vperm.xlu0 %1774, %v1757
        %v1776 = vpop.permute.xlu0 %1775
        %1779 = vset.pattern.permute.xlu0 32
        %1780 = vperm.xlu0 %1779, %v1758
        %v1781 = vpop.permute.xlu0 %1780
        %1784 = vset.pattern.permute.xlu0 32
        %1785 = vperm.xlu0 %1784, %v1759
        %v1786 = vpop.permute.xlu0 %1785
        %1789 = vset.pattern.permute.xlu0 32
        %1790 = vperm.xlu0 %1789, %v1760
        %v1791 = vpop.permute.xlu0 %1790
        %1794 = vset.pattern.permute.xlu0 32
        %1795 = vperm.xlu0 %1794, %v1761
        %v1796 = vpop.permute.xlu0 %1795
        %1799 = vset.pattern.permute.xlu0 32
        %1800 = vperm.xlu0 %1799, %v1762
        %v1801 = vpop.permute.xlu0 %1800
        %1804 = vset.pattern.permute.xlu0 32
        %1805 = vperm.xlu0 %1804, %v1763
        %v1806 = vpop.permute.xlu0 %1805
        %1809 = vset.pattern.permute.xlu0 32
        %1810 = vperm.xlu0 %1809, %v1764
        %v1811 = vpop.permute.xlu0 %1810
        %1814 = vset.pattern.permute.xlu0 32
        %1815 = vperm.xlu0 %1814, %v1765
        %v1816 = vpop.permute.xlu0 %1815
        %1819 = vset.pattern.permute.xlu0 32
        %1820 = vperm.xlu0 %1819, %v1766
        %v1821 = vpop.permute.xlu0 %1820
        %1824 = vset.pattern.permute.xlu0 32
        %1825 = vperm.xlu0 %1824, %v1767
        %v1826 = vpop.permute.xlu0 %1825
        %1829 = vset.pattern.permute.xlu0 32
        %1830 = vperm.xlu0 %1829, %v1768
        %v1831 = vpop.permute.xlu0 %1830
        %1834 = vset.pattern.permute.xlu0 32
        %1835 = vperm.xlu0 %1834, %v1769
        %v1836 = vpop.permute.xlu0 %1835
        %1839 = vset.pattern.permute.xlu0 32
        %1840 = vperm.xlu0 %1839, %v1770
        %v1841 = vpop.permute.xlu0 %1840
        %1844 = vset.pattern.permute.xlu0 32
        %1845 = vperm.xlu0 %1844, %v1771
        %v1846 = vpop.permute.xlu0 %1845
        %1849 = vset.pattern.permute.xlu0 32
        %1850 = vperm.xlu0 %1849, %v1772
        %v1851 = vpop.permute.xlu0 %1850
        %v1853 = vmul.f32 %v1723, %v1776
        %v1854 = vmul.f32 %v1724, %v1781
        %v1855 = vmul.f32 %v1725, %v1786
        %v1856 = vmul.f32 %v1726, %v1791
        %v1857 = vmul.f32 %v1727, %v1796
        %v1858 = vmul.f32 %v1728, %v1801
        %v1859 = vmul.f32 %v1729, %v1806
        %v1860 = vmul.f32 %v1730, %v1811
        %v1861 = vmul.f32 %v1731, %v1816
        %v1862 = vmul.f32 %v1732, %v1821
        %v1863 = vmul.f32 %v1733, %v1826
        %v1864 = vmul.f32 %v1734, %v1831
        %v1865 = vmul.f32 %v1735, %v1836
        %v1866 = vmul.f32 %v1736, %v1841
        %v1867 = vmul.f32 %v1737, %v1846
        %v1868 = vmul.f32 %v1738, %v1851
        %v1869 = vld [vmem:[%s317] sm:$0xff]
        %v1870 = vld [vmem:[%s317 + $0x8] sm:$0xff]
        %v1871 = vld [vmem:[%s317 + $0x10] sm:$0xff]
        %v1872 = vld [vmem:[%s317 + $0x18] sm:$0xff]
        %v1873 = vld [vmem:[%s317 + $0x20] sm:$0xff]
        %v1874 = vld [vmem:[%s317 + $0x28] sm:$0xff]
        %v1875 = vld [vmem:[%s317 + $0x30] sm:$0xff]
        %v1876 = vld [vmem:[%s317 + $0x38] sm:$0xff]
        %v1877 = vld [vmem:[%s317 + $0x40] sm:$0xff]
        %v1878 = vld [vmem:[%s317 + $0x48] sm:$0xff]
        %v1879 = vld [vmem:[%s317 + $0x50] sm:$0xff]
        %v1880 = vld [vmem:[%s317 + $0x58] sm:$0xff]
        %v1881 = vld [vmem:[%s317 + $0x60] sm:$0xff]
        %v1882 = vld [vmem:[%s317 + $0x68] sm:$0xff]
        %v1883 = vld [vmem:[%s317 + $0x70] sm:$0xff]
        %v1884 = vld [vmem:[%s317 + $0x78] sm:$0xff]
        %v1885 = vadd.f32 %v1853, %v1869
        %v1886 = vadd.f32 %v1854, %v1870
        %v1887 = vadd.f32 %v1855, %v1871
        %v1888 = vadd.f32 %v1856, %v1872
        %v1889 = vadd.f32 %v1857, %v1873
        %v1890 = vadd.f32 %v1858, %v1874
        %v1891 = vadd.f32 %v1859, %v1875
        %v1892 = vadd.f32 %v1860, %v1876
        %v1893 = vadd.f32 %v1861, %v1877
        %v1894 = vadd.f32 %v1862, %v1878
        %v1895 = vadd.f32 %v1863, %v1879
        %v1896 = vadd.f32 %v1864, %v1880
        %v1897 = vadd.f32 %v1865, %v1881
        %v1898 = vadd.f32 %v1866, %v1882
        %v1899 = vadd.f32 %v1867, %v1883
        %v1900 = vadd.f32 %v1868, %v1884
        %vm1901 = vcmask 261120
        %1902 = vst.msk [vmem:[%s337] sm:$0xff] %vm1901, %v1885
        %1903 = vst.msk [vmem:[%s337 + $0x8] sm:$0xff] %vm1901, %v1886
        %1904 = vst.msk [vmem:[%s337 + $0x10] sm:$0xff] %vm1901, %v1887
        %1905 = vst.msk [vmem:[%s337 + $0x18] sm:$0xff] %vm1901, %v1888
        %1906 = vst.msk [vmem:[%s337 + $0x20] sm:$0xff] %vm1901, %v1889
        %1907 = vst.msk [vmem:[%s337 + $0x28] sm:$0xff] %vm1901, %v1890
        %1908 = vst.msk [vmem:[%s337 + $0x30] sm:$0xff] %vm1901, %v1891
        %1909 = vst.msk [vmem:[%s337 + $0x38] sm:$0xff] %vm1901, %v1892
        %1910 = vst.msk [vmem:[%s337 + $0x40] sm:$0xff] %vm1901, %v1893
        %1911 = vst.msk [vmem:[%s337 + $0x48] sm:$0xff] %vm1901, %v1894
        %1912 = vst.msk [vmem:[%s337 + $0x50] sm:$0xff] %vm1901, %v1895
        %1913 = vst.msk [vmem:[%s337 + $0x58] sm:$0xff] %vm1901, %v1896
        %1914 = vst.msk [vmem:[%s337 + $0x60] sm:$0xff] %vm1901, %v1897
        %1915 = vst.msk [vmem:[%s337 + $0x68] sm:$0xff] %vm1901, %v1898
        %1916 = vst.msk [vmem:[%s337 + $0x70] sm:$0xff] %vm1901, %v1899
        %1917 = vst.msk [vmem:[%s337 + $0x78] sm:$0xff] %vm1901, %v1900
      $region52: #{tpu_custom_call.1} parent=43 // pred_fallthru
        _
      %s1918 = smul.u32 16, %s24
      %p1919 = scmp.lt.s32.totalorder %s23, 1
      %s1920 = scalar_select %p1919, %s23, 1
      %p1921 = scmp.lt.s32.totalorder %s1918, 31
      %s1922 = scalar_select %p1921, %s1918, 31
      %s1923 = smul.addr %s1920, 32
      %s1924 = sadd.s32 %s1922, %s1923
      %s1925 = smul.addr %s1924, 8
      %s1926 = scalar_lea.vmem %s6, %s1925
      // Predicated region
      $region53: #{tpu_custom_call.1} parent=43 // pred_check
        %p1927 = pneg %p200
      $region54: #{tpu_custom_call.1} parent=43 // pred_check_branch
        %1929 = sbr.rel (%p1927) target = $region56
      $region55: #{tpu_custom_call.1} parent=43 // pred_region
        %s1930 = smul.u32 16, %s24
      $region56: #{tpu_custom_call.1} parent=43 // pred_fallthru
        _
    $region44: #{tpu_custom_call.1} parent=5 // pred_fallthru
      _
    %p1931 = scmp.le.s32.totalorder 2, %s13
    // Predicated region
    $region57: #{tpu_custom_call.1} parent=5 // pred_check
      %p1932 = pneg %p1931
    $region58: #{tpu_custom_call.1} parent=5 // pred_check_branch
      %1934 = sbr.rel (%p1932) target = $region60
    $region59: #{tpu_custom_call.1} parent=5 // pred_region
      %s1935 = ssub.s32 %s13, 2
      // Predicated region
      $region61: #{tpu_custom_call.1} parent=59 // pred_check
        %p1936 = pneg %p206
      $region62: #{tpu_custom_call.1} parent=59 // pred_check_branch
        %1938 = sbr.rel (%p1936) target = $region64
      $region63: #{tpu_custom_call.1} parent=59 // pred_region
        %s1939 = smul.u32 16, %s27
        %p1940 = scmp.lt.s32.totalorder %s26, 1
        %s1941 = scalar_select %p1940, %s26, 1
        %p1942 = scmp.lt.s32.totalorder %s1939, 31
        %s1943 = scalar_select %p1942, %s1939, 31
        %s1944 = smul.addr %s1941, 32
        %s1945 = sadd.s32 %s1943, %s1944
        %s1946 = smul.addr %s1945, 8
        %s1947 = scalar_lea.vmem %s6, %s1946
      $region64: #{tpu_custom_call.1} parent=59 // pred_fallthru
        _
    $region60: #{tpu_custom_call.1} parent=5 // pred_fallthru
      _
  $region6: #{tpu_custom_call.1} parent=0 // loop_footer
    %s17 = sadd.s32 1, %s13
  $region7: #{tpu_custom_call.1} parent=0 // loop_footer_branch
    %12 = sbr.rel target = $region3
  $region8: #{tpu_custom_call.1} parent=0 // loop_exit
    _

</llo_original>
